<compile_context>
chip_gen: v6e
topology: v6e:2x2x1
jax: 0.10.0
libtpu: 0.0.40
codegen_flags: <defaults>
</compile_context>

<pallas_src>
import numpy as np
import jax
import jax.numpy as jnp
from jax.experimental import pallas as pl
from jax.experimental.pallas import tpu as pltpu


# ----------------------------------------------------------------------------
# Deterministic parameter initialization (mirrors the PyTorch module structure)
# ----------------------------------------------------------------------------
def init_linear(key, in_dim, out_dim):
    k1, k2 = jax.random.split(key)
    bound = 1.0 / (in_dim ** 0.5)
    w = jax.random.uniform(k1, (in_dim, out_dim), jnp.float32, -bound, bound)
    b = jax.random.uniform(k2, (1, out_dim), jnp.float32, -bound, bound)
    return {"w": w, "b": b}


def init_swiss_layer(key, t_seq_bits, t_layer_dim, t_num_layers, num_layers,
                     one_hot_vocab_len=None, one_hot_embedding_dim=None,
                     input_embedding_dim=None):
    params = {"t_layers": [], "layers": [], "embedding": None}
    if t_num_layers > 0:
        key, sub = jax.random.split(key)
        params["t_layers"].append(init_linear(sub, t_seq_bits, t_layer_dim))
        for _ in range(t_num_layers - 1):
            key, sub = jax.random.split(key)
            params["t_layers"].append(init_linear(sub, t_layer_dim, t_layer_dim))
    else:
        t_layer_dim = t_seq_bits
    hidden_dim = t_layer_dim
    if input_embedding_dim is not None:
        hidden_dim += input_embedding_dim
    if one_hot_vocab_len is not None and one_hot_embedding_dim is not None:
        hidden_dim += one_hot_embedding_dim
        key, sub = jax.random.split(key)
        emb = 0.1 * jax.random.normal(
            sub, (one_hot_vocab_len + 1, one_hot_embedding_dim), jnp.float32)
        emb = emb.at[one_hot_vocab_len].set(0.0)  # padding_idx row is zero
        params["embedding"] = emb
    for _ in range(num_layers):
        key, sub = jax.random.split(key)
        params["layers"].append(init_linear(sub, hidden_dim, hidden_dim))
    return params, hidden_dim


def init_encoder(key, t_seq_bits, t_layer_dim, t_num_layers, fc_layers,
                 encoder_layers, one_hot_vocab_len, one_hot_embedding_dim):
    key, sub = jax.random.split(key)
    initial, _ = init_swiss_layer(sub, t_seq_bits, t_layer_dim, t_num_layers, fc_layers,
                                  one_hot_vocab_len, one_hot_embedding_dim, None)
    t_out = t_seq_bits if t_num_layers == 0 else t_layer_dim
    input_embedding_dim = one_hot_embedding_dim + t_out
    enc_layers = []
    out_dim = None
    for _ in range(encoder_layers):
        key, sub = jax.random.split(key)
        lp, hd = init_swiss_layer(sub, t_seq_bits, t_layer_dim, t_num_layers, fc_layers,
                                  one_hot_vocab_len, one_hot_embedding_dim,
                                  input_embedding_dim)
        enc_layers.append(lp)
        out_dim = hd
        input_embedding_dim = input_embedding_dim + one_hot_embedding_dim + t_out
    return {"initial": initial, "layers": enc_layers}, out_dim


def init_decoder(key, t_bits, t_layer_dim, t_num_layers, fc_layers,
                 decoder_layers, input_embedding_dim):
    t_out = t_bits if t_num_layers == 0 else t_layer_dim
    layers = []
    out_dim = None
    for _ in range(decoder_layers):
        key, sub = jax.random.split(key)
        lp, hd = init_swiss_layer(sub, t_bits, t_layer_dim, t_num_layers, fc_layers,
                                  None, None, input_embedding_dim)
        layers.append(lp)
        out_dim = hd
        input_embedding_dim += t_out
    return {"layers": layers}, out_dim


def init_head(key, num_layers, input_dim, hidden_dim):
    hidden = []
    cur = input_dim
    for _ in range(num_layers):
        key, sub = jax.random.split(key)
        hidden.append(init_linear(sub, cur, hidden_dim))
        cur = hidden_dim
    key, sub = jax.random.split(key)
    final = init_linear(sub, cur, 1)
    return {"hidden": hidden, "final": final}


def init_seq_model(key, config):
    enc_cfg, dec_cfg, out_cfg = config["encoder"], config["decoder"], config["output"]
    k_enc, k_dec, k_mse, k_bce = jax.random.split(key, 4)
    encoder, enc_out_dim = init_encoder(
        k_enc, config["t_seq_bits"],
        enc_cfg["t_layer_dim"], enc_cfg["t_num_layers"], enc_cfg["fc_layers"],
        enc_cfg["encoder_layers"], enc_cfg["one_hot_vocab_len"],
        enc_cfg["one_hot_embedding_dim"])
    decoder, dec_out_dim = init_decoder(
        k_dec, config["t_bits"], dec_cfg["t_layer_dim"], dec_cfg["t_num_layers"],
        dec_cfg["fc_layers"], dec_cfg["decoder_layers"], enc_out_dim)
    mse_head = init_head(k_mse, out_cfg["mse_output_layers"], dec_out_dim,
                         out_cfg["mse_dim"])
    bce_head = init_head(k_bce, out_cfg["bce_output_layers"], dec_out_dim,
                         out_cfg["bce_dim"])
    return {"encoder": encoder, "decoder": decoder,
            "mse_head": mse_head, "bce_head": bce_head}


# ----------------------------------------------------------------------------
# Fused forward: one pallas_call for the whole SeqModel
# ----------------------------------------------------------------------------
def make_fused_forward(params, config, B):
    S = config["t_seq_len"]
    t_seq_bits = config["t_seq_bits"]
    t_bits = config["t_bits"]
    vocab = config["encoder"]["one_hot_vocab_len"] + 1
    vocab_pad = -(-vocab // 8) * 8
    rows = B * S
    f32 = jnp.float32
    LANE = 128
    # NOTE: torch's encoder ends with .squeeze(); this matches only for B > 1.
    assert B > 1, "B == 1 changes rank in the torch reference (squeeze)"

    # ---- pack every parameter (plus pool/expand constants) into ONE slab ----
    class Packer:
        def __init__(self):
            self.row = 0
            self.items = []

        def add(self, arr):
            a = np.asarray(arr, dtype=np.float32)
            if a.ndim == 1:
                a = a[None, :]
            r, c = a.shape
            assert c <= LANE, "parameter wider than one lane tile"
            handle = (self.row, r, c)
            self.items.append((self.row, a))
            self.row += -(-r // 8) * 8          # keep every block 8-row aligned
            return handle

        def finalize(self):
            slab = np.zeros((max(self.row, 8), LANE), np.float32)
            for off, a in self.items:
                slab[off:off + a.shape[0], :a.shape[1]] = a
            return jnp.asarray(slab)

    packer = Packer()

    def pack_linear(lyr):
        return {"w": packer.add(lyr["w"]), "b": packer.add(lyr["b"])}

    def pack_swiss(lp, t_in_dim):
        spec = {"t_layers": [pack_linear(l) for l in lp["t_layers"]],
                "embedding": None, "layers": []}
        t_out = (np.asarray(lp["t_layers"][-1]["w"]).shape[1]
                 if lp["t_layers"] else t_in_dim)
        dims = [t_out]
        if lp["embedding"] is not None:
            emb = np.asarray(lp["embedding"], np.float32)
            pad = (-emb.shape[0]) % 8
            if pad:
                emb = np.concatenate(
                    [emb, np.zeros((pad, emb.shape[1]), np.float32)], axis=0)
            spec["embedding"] = packer.add(emb)          # rows padded to vocab_pad
            dims.append(emb.shape[1])
        if lp["layers"]:
            first = lp["layers"][0]
            w0 = np.asarray(first["w"], np.float32)
            rem = w0.shape[0] - sum(dims)                # input_embedding rows
            if rem > 0:
                dims.append(rem)
            blocks, off = [], 0
            for d in dims:                               # order: t_seq, emb, input
                blocks.append(packer.add(w0[off:off + d, :]))
                off += d
            spec["layers"].append({"w_blocks": blocks, "b": packer.add(first["b"])})
            for l in lp["layers"][1:]:
                spec["layers"].append(pack_linear(l))
        return spec

    spec_enc_initial = pack_swiss(params["encoder"]["initial"], t_seq_bits)
    spec_enc_layers = [pack_swiss(lp, t_seq_bits) for lp in params["encoder"]["layers"]]
    spec_dec_layers = [pack_swiss(lp, t_bits) for lp in params["decoder"]["layers"]]

    # ---- fuse the two output heads at init time (2 matmuls total) ----
    def fuse_heads(bce, mse):
        if len(bce["hidden"]) != len(mse["hidden"]):
            return None
        hidden = []
        for i, (lb, lm) in enumerate(zip(bce["hidden"], mse["hidden"])):
            wb, wm = np.asarray(lb["w"], np.float32), np.asarray(lm["w"], np.float32)
            if i == 0:
                w = np.concatenate([wb, wm], axis=1)
            else:
                w = np.zeros((wb.shape[0] + wm.shape[0],
                              wb.shape[1] + wm.shape[1]), np.float32)
                w[:wb.shape[0], :wb.shape[1]] = wb
                w[wb.shape[0]:, wb.shape[1]:] = wm
            b = np.concatenate([np.asarray(lb["b"]), np.asarray(lm["b"])], axis=1)
            hidden.append({"w": w, "b": b})
        fb, fm = bce["final"], mse["final"]
        fwb, fwm = np.asarray(fb["w"], np.float32), np.asarray(fm["w"], np.float32)
        if len(bce["hidden"]) == 0:
            fw = np.concatenate([fwb, fwm], axis=1)
        else:
            fw = np.zeros((fwb.shape[0] + fwm.shape[0], 2), np.float32)
            fw[:fwb.shape[0], 0:1] = fwb
            fw[fwb.shape[0]:, 1:2] = fwm
        fbias = np.concatenate([np.asarray(fb["b"]), np.asarray(fm["b"])], axis=1)
        return {"hidden": hidden, "final": {"w": fw, "b": fbias}}

    fused = fuse_heads(params["bce_head"], params["mse_head"])
    if fused is not None:
        head_spec = {"fused": {"hidden": [pack_linear(l) for l in fused["hidden"]],
                               "final": pack_linear(fused["final"])}}
    else:
        head_spec = {
            "bce": {"hidden": [pack_linear(l) for l in params["bce_head"]["hidden"]],
                    "final": pack_linear(params["bce_head"]["final"])},
            "mse": {"hidden": [pack_linear(l) for l in params["mse_head"]["hidden"]],
                    "final": pack_linear(params["mse_head"]["final"])}}

    # Constant pool / expand matmul operands live in the slab too (no extra DMAs).
    row_batch = np.arange(rows) // S
    pool_np = (row_batch[None, :] == np.arange(B)[:, None]).astype(np.float32)  # (B, B*S)
    pool_h = packer.add(pool_np)
    expand_h = packer.add(pool_np.T)                                            # (B*S, B)

    slab = packer.finalize()

    # ------------------------------- kernel ----------------------------------
    def kernel(t_seq_ref, idx_ref, t_ref, slab_ref, out_ref):
        def read(h):
            off, r, c = h
            return slab_ref[off:off + r, 0:c]

        def dense(x, lyr, act=False):
            y = jnp.dot(x, read(lyr["w"]), preferred_element_type=f32) + read(lyr["b"])
            return jnp.maximum(y, 0.0) if act else y

        t_seq = t_seq_ref[...]                               # (B*S, t_seq_bits)
        t_in = t_ref[...]                                    # (B, t_bits)
        # One-hot built ONCE and reused by every embedding lookup (MXU matmul).
        iota = jax.lax.broadcasted_iota(jnp.int32, (rows, vocab_pad), 1)
        onehot = (idx_ref[...] == iota).astype(f32)          # (B*S, vocab_pad)
        pool = read(pool_h)                                  # (B, B*S): seq-sum
        expand = read(expand_h)                              # (B*S, B): broadcast

        def swiss(sp, ts, inp):
            for lyr in sp["t_layers"]:
                ts = dense(ts, lyr, act=True)
            parts = [ts]
            if sp["embedding"] is not None:
                parts.append(jnp.dot(onehot, read(sp["embedding"]),
                                     preferred_element_type=f32))
            if inp is not None:
                parts.append(inp)
            if not sp["layers"]:
                # TODO(synk): num_layers==0 path (unused by this config).
                return jnp.concatenate(parts, axis=-1)
            first = sp["layers"][0]
            # concat replaced by partial dots against 8-row-aligned weight blocks,
            # accumulated strictly as acc += dot (v7x MRB in-place accumulate).
            acc = jnp.dot(parts[0], read(first["w_blocks"][0]),
                          preferred_element_type=f32)
            for part, wb in zip(parts[1:], first["w_blocks"][1:]):
                acc += jnp.dot(part, read(wb), preferred_element_type=f32)
            x = jnp.maximum(acc + read(first["b"]), 0.0)
            for lyr in sp["layers"][1:]:
                x = dense(x, lyr, act=True)
            return x

        # ---- encoder ----
        x = swiss(spec_enc_initial, t_seq, None)                  # (B*S, H0)
        pooled = jnp.dot(pool, x, preferred_element_type=f32)     # (B, H0) sum over S
        for sp in spec_enc_layers:
            xe = jnp.dot(expand, pooled, preferred_element_type=f32)  # (B*S, H)
            y = swiss(sp, t_seq, xe)
            pooled = jnp.dot(pool, y, preferred_element_type=f32)
        encoded = pooled  # matches torch's .squeeze() for batch > 1

        # ---- decoder ----
        dec_x = encoded
        for sp in spec_dec_layers:
            dec_x = swiss(sp, t_in, dec_x)

        # ---- heads (fused: lane 0 = bce, lane 1 = mse) ----
        if "fused" in head_spec:
            h = dec_x
            for lyr in head_spec["fused"]["hidden"]:
                h = dense(h, lyr, act=True)
            y = dense(h, head_spec["fused"]["final"])             # (B, 2)
        else:
            def run_head(hs, x0):
                for lyr in hs["hidden"]:
                    x0 = dense(x0, lyr, act=True)
                return dense(x0, hs["final"])
            bce = run_head(head_spec["bce"], dec_x)
            mse = run_head(head_spec["mse"], dec_x)
            colp = jax.lax.broadcasted_iota(jnp.int32, (bce.shape[0], 2), 1)
            y = jnp.where(colp == 0,
                          jnp.broadcast_to(bce, (bce.shape[0], 2)),
                          jnp.broadcast_to(mse, (mse.shape[0], 2)))
        col = jax.lax.broadcasted_iota(jnp.int32, y.shape, 1)
        y = jnp.where(col == 0, 1.0 / (1.0 + jnp.exp(-y)), y)     # sigmoid on bce lane
        out_ref[...] = y.astype(out_ref.dtype)

    vmem = pl.BlockSpec(memory_space=pltpu.MemorySpace.VMEM)
    fused_call = pl.pallas_call(
        kernel,
        out_shape=jax.ShapeDtypeStruct((B, 2), jnp.float32),
        in_specs=[vmem, vmem, vmem, vmem],
        out_specs=vmem,
        compiler_params=pltpu.CompilerParams(vmem_limit_bytes=32 * 1024 * 1024),
    )

    def forward(t_seq, one_hot_idx, t):
        t_seq_flat = t_seq.reshape(B * S, t_seq.shape[-1]).astype(jnp.float32)
        idx_flat = one_hot_idx.reshape(B * S, 1).astype(jnp.int32)
        out = fused_call(t_seq_flat, idx_flat, t.astype(jnp.float32), slab)
        return out[:, 0:1], out[:, 1:2]        # (bce, mse)

    return forward


# ----------------------------------------------------------------------------
# Driver
# ----------------------------------------------------------------------------
if __name__ == "__main__":
    config = {
        "t_seq_bits": 8,
        "t_seq_len": 8,
        "t_bits": 8,
        "encoder": {
            "t_layer_dim": 16, "t_num_layers": 1, "fc_layers": 1,
            "encoder_layers": 1, "one_hot_vocab_len": 10,
            "one_hot_embedding_dim": 8,
        },
        "decoder": {
            "t_layer_dim": 16, "t_num_layers": 1, "fc_layers": 1,
            "decoder_layers": 1,
        },
        "output": {
            "mse_output_layers": 1, "mse_dim": 16,
            "bce_output_layers": 1, "bce_dim": 16,
        },
    }

    root = jax.random.PRNGKey(0)
    k_params, k_tseq, k_idx, k_t = jax.random.split(root, 4)
    params = init_seq_model(k_params, config)

    B = 2
    S = config["t_seq_len"]
    t_seq = jax.random.normal(k_tseq, (B, S, config["t_seq_bits"]), jnp.float32)
    one_hot_idx = jax.random.randint(
        k_idx, (B, S), 0, config["encoder"]["one_hot_vocab_len"] + 1, jnp.int32)
    t = jax.random.normal(k_t, (B, config["t_bits"]), jnp.float32)

    forward = jax.jit(make_fused_forward(params, config, B))
    bce_out, mse_out = forward(t_seq, one_hot_idx, t)
    jax.block_until_ready((bce_out, mse_out))

    assert bce_out.shape == (B, 1) and mse_out.shape == (B, 1)
    assert bool(jnp.all(jnp.isfinite(bce_out))) and bool(jnp.all(jnp.isfinite(mse_out)))
    assert bool(jnp.all((bce_out >= 0.0) & (bce_out <= 1.0)))
    print("KERNEL_OK")
</pallas_src>

<mosaic_0001>
module attributes {stable_mosaic.version = 11 : i64} {
  func.func @kernel(%arg0: memref<16x8xf32, #tpu.memory_space<vmem>>, %arg1: memref<16x1xi32, #tpu.memory_space<vmem>>, %arg2: memref<2x8xf32, #tpu.memory_space<vmem>>, %arg3: memref<376x128xf32, #tpu.memory_space<vmem>>, %arg4: memref<2x2xf32, #tpu.memory_space<vmem>>) attributes {dimension_semantics = [], scalar_prefetch = 0 : i64, scratch_operands = 0 : i64, tpu.core_type = #tpu.core_type<tc>} {
    %c0 = arith.constant 0 : index
    %c0_0 = arith.constant 0 : index
    %0 = vector.load %arg0[%c0, %c0_0] : memref<16x8xf32, #tpu.memory_space<vmem>>, vector<16x8xf32>
    %c0_1 = arith.constant 0 : index
    %c0_2 = arith.constant 0 : index
    %1 = vector.load %arg2[%c0_1, %c0_2] : memref<2x8xf32, #tpu.memory_space<vmem>>, vector<2x8xf32>
    %2 = tpu.iota {dimensions = array<i32: 1>} : vector<16x16xi32>
    %c0_3 = arith.constant 0 : index
    %c0_4 = arith.constant 0 : index
    %3 = vector.load %arg1[%c0_3, %c0_4] : memref<16x1xi32, #tpu.memory_space<vmem>>, vector<16x1xi32>
    %4 = vector.broadcast %3 : vector<16x1xi32> to vector<16x16xi32>
    %5 = arith.cmpi eq, %4, %2 : vector<16x16xi32>
    %6 = arith.extui %5 : vector<16x16xi1> to vector<16x16xi32>
    %7 = arith.sitofp %6 : vector<16x16xi32> to vector<16x16xf32>
    %c352 = arith.constant 352 : index
    %c0_5 = arith.constant 0 : index
    %8 = vector.load %arg3[%c352, %c0_5] : memref<376x128xf32, #tpu.memory_space<vmem>>, vector<2x16xf32>
    %c360 = arith.constant 360 : index
    %c0_6 = arith.constant 0 : index
    %9 = vector.load %arg3[%c360, %c0_6] : memref<376x128xf32, #tpu.memory_space<vmem>>, vector<16x2xf32>
    %c0_7 = arith.constant 0 : index
    %c0_8 = arith.constant 0 : index
    %10 = vector.load %arg3[%c0_7, %c0_8] : memref<376x128xf32, #tpu.memory_space<vmem>>, vector<8x16xf32>
    %cst = arith.constant dense<0.000000e+00> : vector<16x16xf32>
    %11 = tpu.matmul %0, %10, %cst {dimension_numbers = #tpu.dot_dimension_numbers<[1], [0], [0], [1], [0, 0, 1, 1], [], []>} : vector<16x8xf32>, vector<8x16xf32>, vector<16x16xf32> -> vector<16x16xf32>
    %c8 = arith.constant 8 : index
    %c0_9 = arith.constant 0 : index
    %12 = vector.load %arg3[%c8, %c0_9] : memref<376x128xf32, #tpu.memory_space<vmem>>, vector<1x16xf32>
    %13 = vector.broadcast %12 : vector<1x16xf32> to vector<16x16xf32>
    %14 = arith.addf %11, %13 : vector<16x16xf32>
    %cst_10 = arith.constant 0.000000e+00 : f32
    %15 = vector.broadcast %cst_10 : f32 to vector<16x16xf32>
    %16 = arith.maximumf %14, %15 : vector<16x16xf32>
    %c16 = arith.constant 16 : index
    %c0_11 = arith.constant 0 : index
    %17 = vector.load %arg3[%c16, %c0_11] : memref<376x128xf32, #tpu.memory_space<vmem>>, vector<16x8xf32>
    %cst_12 = arith.constant dense<0.000000e+00> : vector<16x8xf32>
    %18 = tpu.matmul %7, %17, %cst_12 {dimension_numbers = #tpu.dot_dimension_numbers<[1], [0], [0], [1], [0, 0, 1, 1], [], []>} : vector<16x16xf32>, vector<16x8xf32>, vector<16x8xf32> -> vector<16x8xf32>
    %c32 = arith.constant 32 : index
    %c0_13 = arith.constant 0 : index
    %19 = vector.load %arg3[%c32, %c0_13] : memref<376x128xf32, #tpu.memory_space<vmem>>, vector<16x24xf32>
    %cst_14 = arith.constant dense<0.000000e+00> : vector<16x24xf32>
    %20 = tpu.matmul %16, %19, %cst_14 {dimension_numbers = #tpu.dot_dimension_numbers<[1], [0], [0], [1], [0, 0, 1, 1], [], []>} : vector<16x16xf32>, vector<16x24xf32>, vector<16x24xf32> -> vector<16x24xf32>
    %c48 = arith.constant 48 : index
    %c0_15 = arith.constant 0 : index
    %21 = vector.load %arg3[%c48, %c0_15] : memref<376x128xf32, #tpu.memory_space<vmem>>, vector<8x24xf32>
    %cst_16 = arith.constant dense<0.000000e+00> : vector<16x24xf32>
    %22 = tpu.matmul %18, %21, %cst_16 {dimension_numbers = #tpu.dot_dimension_numbers<[1], [0], [0], [1], [0, 0, 1, 1], [], []>} : vector<16x8xf32>, vector<8x24xf32>, vector<16x24xf32> -> vector<16x24xf32>
    %23 = arith.addf %20, %22 : vector<16x24xf32>
    %c56 = arith.constant 56 : index
    %c0_17 = arith.constant 0 : index
    %24 = vector.load %arg3[%c56, %c0_17] : memref<376x128xf32, #tpu.memory_space<vmem>>, vector<1x24xf32>
    %25 = vector.broadcast %24 : vector<1x24xf32> to vector<16x24xf32>
    %26 = arith.addf %23, %25 : vector<16x24xf32>
    %cst_18 = arith.constant 0.000000e+00 : f32
    %27 = vector.broadcast %cst_18 : f32 to vector<16x24xf32>
    %28 = arith.maximumf %26, %27 : vector<16x24xf32>
    %cst_19 = arith.constant dense<0.000000e+00> : vector<2x24xf32>
    %29 = tpu.matmul %8, %28, %cst_19 {dimension_numbers = #tpu.dot_dimension_numbers<[1], [0], [0], [1], [0, 0, 1, 1], [], []>} : vector<2x16xf32>, vector<16x24xf32>, vector<2x24xf32> -> vector<2x24xf32>
    %cst_20 = arith.constant dense<0.000000e+00> : vector<16x24xf32>
    %30 = tpu.matmul %9, %29, %cst_20 {dimension_numbers = #tpu.dot_dimension_numbers<[1], [0], [0], [1], [0, 0, 1, 1], [], []>} : vector<16x2xf32>, vector<2x24xf32>, vector<16x24xf32> -> vector<16x24xf32>
    %c64 = arith.constant 64 : index
    %c0_21 = arith.constant 0 : index
    %31 = vector.load %arg3[%c64, %c0_21] : memref<376x128xf32, #tpu.memory_space<vmem>>, vector<8x16xf32>
    %cst_22 = arith.constant dense<0.000000e+00> : vector<16x16xf32>
    %32 = tpu.matmul %0, %31, %cst_22 {dimension_numbers = #tpu.dot_dimension_numbers<[1], [0], [0], [1], [0, 0, 1, 1], [], []>} : vector<16x8xf32>, vector<8x16xf32>, vector<16x16xf32> -> vector<16x16xf32>
    %c72 = arith.constant 72 : index
    %c0_23 = arith.constant 0 : index
    %33 = vector.load %arg3[%c72, %c0_23] : memref<376x128xf32, #tpu.memory_space<vmem>>, vector<1x16xf32>
    %34 = vector.broadcast %33 : vector<1x16xf32> to vector<16x16xf32>
    %35 = arith.addf %32, %34 : vector<16x16xf32>
    %cst_24 = arith.constant 0.000000e+00 : f32
    %36 = vector.broadcast %cst_24 : f32 to vector<16x16xf32>
    %37 = arith.maximumf %35, %36 : vector<16x16xf32>
    %c80 = arith.constant 80 : index
    %c0_25 = arith.constant 0 : index
    %38 = vector.load %arg3[%c80, %c0_25] : memref<376x128xf32, #tpu.memory_space<vmem>>, vector<16x8xf32>
    %cst_26 = arith.constant dense<0.000000e+00> : vector<16x8xf32>
    %39 = tpu.matmul %7, %38, %cst_26 {dimension_numbers = #tpu.dot_dimension_numbers<[1], [0], [0], [1], [0, 0, 1, 1], [], []>} : vector<16x16xf32>, vector<16x8xf32>, vector<16x8xf32> -> vector<16x8xf32>
    %c96 = arith.constant 96 : index
    %c0_27 = arith.constant 0 : index
    %40 = vector.load %arg3[%c96, %c0_27] : memref<376x128xf32, #tpu.memory_space<vmem>>, vector<16x48xf32>
    %cst_28 = arith.constant dense<0.000000e+00> : vector<16x48xf32>
    %41 = tpu.matmul %37, %40, %cst_28 {dimension_numbers = #tpu.dot_dimension_numbers<[1], [0], [0], [1], [0, 0, 1, 1], [], []>} : vector<16x16xf32>, vector<16x48xf32>, vector<16x48xf32> -> vector<16x48xf32>
    %c112 = arith.constant 112 : index
    %c0_29 = arith.constant 0 : index
    %42 = vector.load %arg3[%c112, %c0_29] : memref<376x128xf32, #tpu.memory_space<vmem>>, vector<8x48xf32>
    %cst_30 = arith.constant dense<0.000000e+00> : vector<16x48xf32>
    %43 = tpu.matmul %39, %42, %cst_30 {dimension_numbers = #tpu.dot_dimension_numbers<[1], [0], [0], [1], [0, 0, 1, 1], [], []>} : vector<16x8xf32>, vector<8x48xf32>, vector<16x48xf32> -> vector<16x48xf32>
    %44 = arith.addf %41, %43 : vector<16x48xf32>
    %c120 = arith.constant 120 : index
    %c0_31 = arith.constant 0 : index
    %45 = vector.load %arg3[%c120, %c0_31] : memref<376x128xf32, #tpu.memory_space<vmem>>, vector<24x48xf32>
    %cst_32 = arith.constant dense<0.000000e+00> : vector<16x48xf32>
    %46 = tpu.matmul %30, %45, %cst_32 {dimension_numbers = #tpu.dot_dimension_numbers<[1], [0], [0], [1], [0, 0, 1, 1], [], []>} : vector<16x24xf32>, vector<24x48xf32>, vector<16x48xf32> -> vector<16x48xf32>
    %47 = arith.addf %44, %46 : vector<16x48xf32>
    %c144 = arith.constant 144 : index
    %c0_33 = arith.constant 0 : index
    %48 = vector.load %arg3[%c144, %c0_33] : memref<376x128xf32, #tpu.memory_space<vmem>>, vector<1x48xf32>
    %49 = vector.broadcast %48 : vector<1x48xf32> to vector<16x48xf32>
    %50 = arith.addf %47, %49 : vector<16x48xf32>
    %cst_34 = arith.constant 0.000000e+00 : f32
    %51 = vector.broadcast %cst_34 : f32 to vector<16x48xf32>
    %52 = arith.maximumf %50, %51 : vector<16x48xf32>
    %cst_35 = arith.constant dense<0.000000e+00> : vector<2x48xf32>
    %53 = tpu.matmul %8, %52, %cst_35 {dimension_numbers = #tpu.dot_dimension_numbers<[1], [0], [0], [1], [0, 0, 1, 1], [], []>} : vector<2x16xf32>, vector<16x48xf32>, vector<2x48xf32> -> vector<2x48xf32>
    %c152 = arith.constant 152 : index
    %c0_36 = arith.constant 0 : index
    %54 = vector.load %arg3[%c152, %c0_36] : memref<376x128xf32, #tpu.memory_space<vmem>>, vector<8x16xf32>
    %cst_37 = arith.constant dense<0.000000e+00> : vector<2x16xf32>
    %55 = tpu.matmul %1, %54, %cst_37 {dimension_numbers = #tpu.dot_dimension_numbers<[1], [0], [0], [1], [0, 0, 1, 1], [], []>} : vector<2x8xf32>, vector<8x16xf32>, vector<2x16xf32> -> vector<2x16xf32>
    %c160 = arith.constant 160 : index
    %c0_38 = arith.constant 0 : index
    %56 = vector.load %arg3[%c160, %c0_38] : memref<376x128xf32, #tpu.memory_space<vmem>>, vector<1x16xf32>
    %57 = vector.broadcast %56 : vector<1x16xf32> to vector<2x16xf32>
    %58 = arith.addf %55, %57 : vector<2x16xf32>
    %cst_39 = arith.constant 0.000000e+00 : f32
    %59 = vector.broadcast %cst_39 : f32 to vector<2x16xf32>
    %60 = arith.maximumf %58, %59 : vector<2x16xf32>
    %c168 = arith.constant 168 : index
    %c0_40 = arith.constant 0 : index
    %61 = vector.load %arg3[%c168, %c0_40] : memref<376x128xf32, #tpu.memory_space<vmem>>, vector<16x64xf32>
    %cst_41 = arith.constant dense<0.000000e+00> : vector<2x64xf32>
    %62 = tpu.matmul %60, %61, %cst_41 {dimension_numbers = #tpu.dot_dimension_numbers<[1], [0], [0], [1], [0, 0, 1, 1], [], []>} : vector<2x16xf32>, vector<16x64xf32>, vector<2x64xf32> -> vector<2x64xf32>
    %c184 = arith.constant 184 : index
    %c0_42 = arith.constant 0 : index
    %63 = vector.load %arg3[%c184, %c0_42] : memref<376x128xf32, #tpu.memory_space<vmem>>, vector<48x64xf32>
    %cst_43 = arith.constant dense<0.000000e+00> : vector<2x64xf32>
    %64 = tpu.matmul %53, %63, %cst_43 {dimension_numbers = #tpu.dot_dimension_numbers<[1], [0], [0], [1], [0, 0, 1, 1], [], []>} : vector<2x48xf32>, vector<48x64xf32>, vector<2x64xf32> -> vector<2x64xf32>
    %65 = arith.addf %62, %64 : vector<2x64xf32>
    %c232 = arith.constant 232 : index
    %c0_44 = arith.constant 0 : index
    %66 = vector.load %arg3[%c232, %c0_44] : memref<376x128xf32, #tpu.memory_space<vmem>>, vector<1x64xf32>
    %67 = vector.broadcast %66 : vector<1x64xf32> to vector<2x64xf32>
    %68 = arith.addf %65, %67 : vector<2x64xf32>
    %cst_45 = arith.constant 0.000000e+00 : f32
    %69 = vector.broadcast %cst_45 : f32 to vector<2x64xf32>
    %70 = arith.maximumf %68, %69 : vector<2x64xf32>
    %c240 = arith.constant 240 : index
    %c0_46 = arith.constant 0 : index
    %71 = vector.load %arg3[%c240, %c0_46] : memref<376x128xf32, #tpu.memory_space<vmem>>, vector<64x32xf32>
    %cst_47 = arith.constant dense<0.000000e+00> : vector<2x32xf32>
    %72 = tpu.matmul %70, %71, %cst_47 {dimension_numbers = #tpu.dot_dimension_numbers<[1], [0], [0], [1], [0, 0, 1, 1], [], []>} : vector<2x64xf32>, vector<64x32xf32>, vector<2x32xf32> -> vector<2x32xf32>
    %c304 = arith.constant 304 : index
    %c0_48 = arith.constant 0 : index
    %73 = vector.load %arg3[%c304, %c0_48] : memref<376x128xf32, #tpu.memory_space<vmem>>, vector<1x32xf32>
    %74 = vector.broadcast %73 : vector<1x32xf32> to vector<2x32xf32>
    %75 = arith.addf %72, %74 : vector<2x32xf32>
    %cst_49 = arith.constant 0.000000e+00 : f32
    %76 = vector.broadcast %cst_49 : f32 to vector<2x32xf32>
    %77 = arith.maximumf %75, %76 : vector<2x32xf32>
    %c312 = arith.constant 312 : index
    %c0_50 = arith.constant 0 : index
    %78 = vector.load %arg3[%c312, %c0_50] : memref<376x128xf32, #tpu.memory_space<vmem>>, vector<32x2xf32>
    %cst_51 = arith.constant dense<0.000000e+00> : vector<2x2xf32>
    %79 = tpu.matmul %77, %78, %cst_51 {dimension_numbers = #tpu.dot_dimension_numbers<[1], [0], [0], [1], [0, 0, 1, 1], [], []>} : vector<2x32xf32>, vector<32x2xf32>, vector<2x2xf32> -> vector<2x2xf32>
    %c344 = arith.constant 344 : index
    %c0_52 = arith.constant 0 : index
    %80 = vector.load %arg3[%c344, %c0_52] : memref<376x128xf32, #tpu.memory_space<vmem>>, vector<1x2xf32>
    %81 = vector.broadcast %80 : vector<1x2xf32> to vector<2x2xf32>
    %82 = arith.addf %79, %81 : vector<2x2xf32>
    %83 = tpu.iota {dimensions = array<i32: 1>} : vector<2x2xi32>
    %c0_i32 = arith.constant 0 : i32
    %84 = vector.broadcast %c0_i32 : i32 to vector<2x2xi32>
    %85 = arith.cmpi eq, %83, %84 : vector<2x2xi32>
    %cst_53 = arith.constant 0.000000e+00 : f32
    %86 = vector.broadcast %cst_53 : f32 to vector<2x2xf32>
    %87 = arith.subf %86, %82 : vector<2x2xf32>
    %88 = math.exp %87 : vector<2x2xf32>
    %cst_54 = arith.constant 1.000000e+00 : f32
    %89 = vector.broadcast %cst_54 : f32 to vector<2x2xf32>
    %90 = arith.addf %89, %88 : vector<2x2xf32>
    %cst_55 = arith.constant 1.000000e+00 : f32
    %91 = vector.broadcast %cst_55 : f32 to vector<2x2xf32>
    %92 = arith.divf %91, %90 : vector<2x2xf32>
    %93 = arith.select %85, %92, %82 : vector<2x2xi1>, vector<2x2xf32>
    %c0_56 = arith.constant 0 : index
    %c0_57 = arith.constant 0 : index
    %94 = vector.load %arg4[%c0_56, %c0_57] : memref<2x2xf32, #tpu.memory_space<vmem>>, vector<2x2xf32>
    tpu.vector_store %arg4[%c0_56, %c0_57], %93 {strides = array<i32>} : memref<2x2xf32, #tpu.memory_space<vmem>>, vector<2x2xf32>,
    return
  }
}

</mosaic_0001>

<llo_original>
// kernel: forward.1
$region0: #{forward.1}
  #allocation0 [shape = 'u32[]', space=smem, size = 0x4, offset = 0x4, fixed_abs, tag = 'smem constant byte address 0x4 - core index']
  #allocation1 [shape = 'u32[144,128]{1,0:T(1,128)}', space=vmem, size = 0x12000, scoped, tag = 'internal scratch']
  %s0 = inlined_call_operand.vmem [shape: f32[16,8], index: 0, kind: input, shape index: {}]
  %s1 = inlined_call_operand.vmem [shape: s32[16,1], index: 1, kind: input, shape index: {}]
  %s2 = inlined_call_operand.vmem [shape: f32[2,8], index: 2, kind: input, shape index: {}]
  %s3 = inlined_call_operand.hbm [shape: f32[376,128], index: 3, kind: input, shape index: {}]
  %s4 = inlined_call_operand.vmem [shape: f32[2,2], index: 4, kind: output, shape index: {}]
  %s5 = sld [smem:[#allocation0]]
  $region30: #{forward.1} parent=0
    _
  %s7 = ssub.s32 1, %s5
  %s8 = scalar_select 0, %s7, %s5
  $region1: #{forward.1} parent=0
    #allocation2 [shape = 'u8[192512]{0}', space=vmem, size = 0x2f000, scoped, tag = 'input window, operand 3, single buffered']
    #allocation3 [shape = 's32[1]{0}', space=sflag, size = 0x4, scoped, tag = 'scoped memory for forward.1']
    %9 = vsyncpa [#allocation3], 0
    // Predicated region
    $region2: #{forward.1} parent=1 // pred_check
      _
    $region3: #{forward.1} parent=1 // pred_check_branch
      %11 = sbr.rel (0) target = $region5
    $region4: #{forward.1} parent=1 // pred_region
      _
    $region5: #{forward.1} parent=1 // pred_fallthru
      _
    // Predicated region
    $region6: #{forward.1} parent=1 // pred_check
      _
    $region7: #{forward.1} parent=1 // pred_check_branch
      %13 = sbr.rel (0) target = $region9
    $region8: #{forward.1} parent=1 // pred_region
      _
    $region9: #{forward.1} parent=1 // pred_fallthru
      _
    // Predicated region
    $region10: #{forward.1} parent=1 // pred_check
      _
    $region11: #{forward.1} parent=1 // pred_check_branch
      %15 = sbr.rel (0) target = $region13
    $region12: #{forward.1} parent=1 // pred_region
      _
    $region13: #{forward.1} parent=1 // pred_fallthru
      _
    // Predicated region
    $region14: #{forward.1} parent=1 // pred_check
      _
    $region15: #{forward.1} parent=1 // pred_check_branch
      %17 = sbr.rel (0) target = $region17
    $region16: #{forward.1} parent=1 // pred_region
      %s19 = ssub.s32 6016, 6016
      %20 = vsyncadd [#allocation3], %s19
      %s21 = sshll.u32 [#allocation2], 4
      %s22 = int_to_ptr.vmem [resolvable:$true] %s21
      %27 = dma.hbm_to_vmem [thread:$0]  %s3, 6016, %s22, [#allocation3], 128, 128, 8
    $region17: #{forward.1} parent=1 // pred_fallthru
      _
    // Predicated region
    $region18: #{forward.1} parent=1 // pred_check
      _
    $region19: #{forward.1} parent=1 // pred_check_branch
      %29 = sbr.rel (0) target = $region21
    $region20: #{forward.1} parent=1 // pred_region
      %30 = dma.done [#allocation3], 6016
    $region21: #{forward.1} parent=1 // pred_fallthru
      _
    %v31 = vld [vmem:[%s0] sm:$0xff]
    %v32 = vld [vmem:[%s0 + $0x8] sm:$0xff]
    %v33 = vld [vmem:[%s2] sm:$0x3]
    %v34 = vlaneseq
    %v35 = vand.u32 %v34, 127
    %v36 = vld [vmem:[%s1] sm:$0xff]
    %v37 = vld [vmem:[%s1 + $0x8] sm:$0xff]
    %38 = vset.pattern.permute.xlu0 0
    %39 = vperm.xlu0 %38, %v36
    %v40 = vpop.permute.xlu0 %39
    %41 = vset.pattern.permute.xlu0 0
    %42 = vperm.xlu0 %41, %v37
    %v43 = vpop.permute.xlu0 %42
    %vm44 = vcmp.eq.s32.totalorder %v40, %v35
    %vm45 = vcmp.eq.s32.totalorder %v43, %v35
    %v46 = vsel %vm44, 1, 0
    %v47 = vsel %vm45, 1, 0
    %v48 = vcvt.s32.f32 %v46
    %v49 = vcvt.s32.f32 %v47
    %v50 = vld [vmem:[#allocation2 + $0x160] sm:$0x3]
    %v51 = vld [vmem:[#allocation2 + $0x168] sm:$0xff]
    %v52 = vld [vmem:[#allocation2 + $0x170] sm:$0xff]
    %v53 = vld [vmem:[#allocation2] sm:$0xff]
    %v54 = vld [vmem:[#allocation2 + $0x8] sm:$0x1]
    %v55 = vlaneseq
    %v56 = vshrl.u32 %v55, 7
    %v57 = vsub.s32 0, %v56
    %v58 = vrot.slane %v54, %v57
    %vm59 = vcmask 64512
    %v61 = vsel %vm59, %v31, 0
    %v64 = vsel %vm59, %v32, 0
    %66 = vmatprep.subr.mxu0 0.0
    %67 = vmatpush1.msra.mxu0 0.0
    %68 = vmatprep.subr.mxu0 0.0
    %69 = vmatpush1.msra.mxu0 0.0
    %70 = vmatprep.subr.mxu0 0.0
    %71 = vmatpush1.msra.mxu0 0.0
    %72 = vmatprep.subr.mxu0 0.0
    %73 = vmatpush1.msra.mxu0 0.0
    %74 = vmatprep.subr.mxu0 0.0
    %75 = vmatpush1.msra.mxu0 0.0
    %76 = vmatprep.subr.mxu0 0.0
    %77 = vmatpush1.msra.mxu0 0.0
    %78 = vmatprep.subr.mxu0 0.0
    %79 = vmatpush1.msra.mxu0 0.0
    %80 = vmatprep.subr.mxu0 0.0
    %81 = vmatpush1.msra.mxu0 0.0
    %82 = vmatprep.subr.mxu0 0.0
    %83 = vmatpush1.msra.mxu0 0.0
    %84 = vmatprep.subr.mxu0 0.0
    %85 = vmatpush1.msra.mxu0 0.0
    %86 = vmatprep.subr.mxu0 0.0
    %87 = vmatpush1.msra.mxu0 0.0
    %88 = vmatprep.subr.mxu0 0.0
    %89 = vmatpush1.msra.mxu0 0.0
    %90 = vmatprep.subr.mxu0 0.0
    %91 = vmatpush1.msra.mxu0 0.0
    %92 = vmatprep.subr.mxu0 0.0
    %93 = vmatpush1.msra.mxu0 0.0
    %94 = vmatprep.subr.mxu0 0.0
    %95 = vmatpush1.msra.mxu0 0.0
    %96 = vmatprep.subr.mxu0 0.0
    %97 = vmatpush1.msra.mxu0 %v53
    %98 = vmatprep.subr.mxu0 0.0
    %99 = vmatpush2.msra.mxu0 0.0
    %100 = vmatprep.subr.mxu0 0.0
    %101 = vmatpush2.msra.mxu0 0.0
    %102 = vmatprep.subr.mxu0 0.0
    %103 = vmatpush2.msra.mxu0 0.0
    %104 = vmatprep.subr.mxu0 0.0
    %105 = vmatpush2.msra.mxu0 0.0
    %106 = vmatprep.subr.mxu0 0.0
    %107 = vmatpush2.msra.mxu0 0.0
    %108 = vmatprep.subr.mxu0 0.0
    %109 = vmatpush2.msra.mxu0 0.0
    %110 = vmatprep.subr.mxu0 0.0
    %111 = vmatpush2.msra.mxu0 0.0
    %112 = vmatprep.subr.mxu0 0.0
    %113 = vmatpush2.msra.mxu0 0.0
    %114 = vmatprep.subr.mxu0 0.0
    %115 = vmatpush2.msra.mxu0 0.0
    %116 = vmatprep.subr.mxu0 0.0
    %117 = vmatpush2.msra.mxu0 0.0
    %118 = vmatprep.subr.mxu0 0.0
    %119 = vmatpush2.msra.mxu0 0.0
    %120 = vmatprep.subr.mxu0 0.0
    %121 = vmatpush2.msra.mxu0 0.0
    %122 = vmatprep.subr.mxu0 0.0
    %123 = vmatpush2.msra.mxu0 0.0
    %124 = vmatprep.subr.mxu0 0.0
    %125 = vmatpush2.msra.mxu0 0.0
    %126 = vmatprep.subr.mxu0 0.0
    %127 = vmatpush2.msra.mxu0 0.0
    %128 = vmatprep.subr.mxu0 0.0
    %129 = vmatpush2.msra.mxu0 0.0
    %130 = vmatprep.mubr.f32.mxu0 0.0
    %131 = vmatmul.mubr.f32.gmra.mxu0 %v61
    %v132 = vpop.f32.mrf.mxu0
    %v133 = vadd.f32 %v58, %v132
    %v134 = vpop.f32.mrf.mxu0
    %135 = vmatprep.mubr.f32.mxu0 0.0
    %136 = vmatmul.mubr.f32.gmra.mxu0 %v64
    %v137 = vpop.f32.mrf.mxu0
    %v138 = vadd.f32 %v58, %v137
    %v139 = vpop.f32.mrf.mxu0
    %140 = vdwg.mxu0
    %v141 = vmax.f32 %v133, 0.0
    %v142 = vmax.f32 %v138, 0.0
    %v143 = vld [vmem:[#allocation2 + $0x10] sm:$0xff]
    %v144 = vld [vmem:[#allocation2 + $0x18] sm:$0xff]
    %vm145 = vcmask 130048
    %v147 = vsel %vm145, %v48, 0
    %v150 = vsel %vm145, %v49, 0
    %152 = vmatprep.subr.mxu0 0.0
    %153 = vmatpush1.msra.mxu0 0.0
    %154 = vmatprep.subr.mxu0 0.0
    %155 = vmatpush1.msra.mxu0 0.0
    %156 = vmatprep.subr.mxu0 0.0
    %157 = vmatpush1.msra.mxu0 0.0
    %158 = vmatprep.subr.mxu0 0.0
    %159 = vmatpush1.msra.mxu0 0.0
    %160 = vmatprep.subr.mxu0 0.0
    %161 = vmatpush1.msra.mxu0 0.0
    %162 = vmatprep.subr.mxu0 0.0
    %163 = vmatpush1.msra.mxu0 0.0
    %164 = vmatprep.subr.mxu0 0.0
    %165 = vmatpush1.msra.mxu0 0.0
    %166 = vmatprep.subr.mxu0 0.0
    %167 = vmatpush1.msra.mxu0 0.0
    %168 = vmatprep.subr.mxu0 0.0
    %169 = vmatpush1.msra.mxu0 0.0
    %170 = vmatprep.subr.mxu0 0.0
    %171 = vmatpush1.msra.mxu0 0.0
    %172 = vmatprep.subr.mxu0 0.0
    %173 = vmatpush1.msra.mxu0 0.0
    %174 = vmatprep.subr.mxu0 0.0
    %175 = vmatpush1.msra.mxu0 0.0
    %176 = vmatprep.subr.mxu0 0.0
    %177 = vmatpush1.msra.mxu0 0.0
    %178 = vmatprep.subr.mxu0 0.0
    %179 = vmatpush1.msra.mxu0 0.0
    %180 = vmatprep.subr.mxu0 0.0
    %181 = vmatpush1.msra.mxu0 %v144
    %182 = vmatprep.subr.mxu0 0.0
    %183 = vmatpush1.msra.mxu0 %v143
    %184 = vmatprep.subr.mxu0 0.0
    %185 = vmatpush2.msra.mxu0 0.0
    %186 = vmatprep.subr.mxu0 0.0
    %187 = vmatpush2.msra.mxu0 0.0
    %188 = vmatprep.subr.mxu0 0.0
    %189 = vmatpush2.msra.mxu0 0.0
    %190 = vmatprep.subr.mxu0 0.0
    %191 = vmatpush2.msra.mxu0 0.0
    %192 = vmatprep.subr.mxu0 0.0
    %193 = vmatpush2.msra.mxu0 0.0
    %194 = vmatprep.subr.mxu0 0.0
    %195 = vmatpush2.msra.mxu0 0.0
    %196 = vmatprep.subr.mxu0 0.0
    %197 = vmatpush2.msra.mxu0 0.0
    %198 = vmatprep.subr.mxu0 0.0
    %199 = vmatpush2.msra.mxu0 0.0
    %200 = vmatprep.subr.mxu0 0.0
    %201 = vmatpush2.msra.mxu0 0.0
    %202 = vmatprep.subr.mxu0 0.0
    %203 = vmatpush2.msra.mxu0 0.0
    %204 = vmatprep.subr.mxu0 0.0
    %205 = vmatpush2.msra.mxu0 0.0
    %206 = vmatprep.subr.mxu0 0.0
    %207 = vmatpush2.msra.mxu0 0.0
    %208 = vmatprep.subr.mxu0 0.0
    %209 = vmatpush2.msra.mxu0 0.0
    %210 = vmatprep.subr.mxu0 0.0
    %211 = vmatpush2.msra.mxu0 0.0
    %212 = vmatprep.subr.mxu0 0.0
    %213 = vmatpush2.msra.mxu0 0.0
    %214 = vmatprep.subr.mxu0 0.0
    %215 = vmatpush2.msra.mxu0 0.0
    %216 = vmatprep.mubr.f32.mxu0 0.0
    %217 = vmatmul.mubr.f32.gmra.mxu0 %v147
    %v218 = vpop.f32.mrf.mxu0
    %v219 = vadd.f32 0.0, %v218
    %v220 = vpop.f32.mrf.mxu0
    %221 = vmatprep.mubr.f32.mxu0 0.0
    %222 = vmatmul.mubr.f32.gmra.mxu0 %v150
    %v223 = vpop.f32.mrf.mxu0
    %v224 = vadd.f32 0.0, %v223
    %v225 = vpop.f32.mrf.mxu0
    %226 = vdwg.mxu0
    %v227 = vld [vmem:[#allocation2 + $0x20] sm:$0xff]
    %v228 = vld [vmem:[#allocation2 + $0x28] sm:$0xff]
    %v229 = vld [vmem:[#allocation2 + $0x30] sm:$0xff]
    %v231 = vsel %vm59, %v219, 0
    %v234 = vsel %vm59, %v224, 0
    %236 = vmatprep.subr.mxu0 0.0
    %237 = vmatpush1.msra.mxu0 0.0
    %238 = vmatprep.subr.mxu0 0.0
    %239 = vmatpush1.msra.mxu0 0.0
    %240 = vmatprep.subr.mxu0 0.0
    %241 = vmatpush1.msra.mxu0 0.0
    %242 = vmatprep.subr.mxu0 0.0
    %243 = vmatpush1.msra.mxu0 0.0
    %244 = vmatprep.subr.mxu0 0.0
    %245 = vmatpush1.msra.mxu0 0.0
    %246 = vmatprep.subr.mxu0 0.0
    %247 = vmatpush1.msra.mxu0 0.0
    %248 = vmatprep.subr.mxu0 0.0
    %249 = vmatpush1.msra.mxu0 0.0
    %250 = vmatprep.subr.mxu0 0.0
    %251 = vmatpush1.msra.mxu0 0.0
    %252 = vmatprep.subr.mxu0 0.0
    %253 = vmatpush1.msra.mxu0 0.0
    %254 = vmatprep.subr.mxu0 0.0
    %255 = vmatpush1.msra.mxu0 0.0
    %256 = vmatprep.subr.mxu0 0.0
    %257 = vmatpush1.msra.mxu0 0.0
    %258 = vmatprep.subr.mxu0 0.0
    %259 = vmatpush1.msra.mxu0 0.0
    %260 = vmatprep.subr.mxu0 0.0
    %261 = vmatpush1.msra.mxu0 0.0
    %262 = vmatprep.subr.mxu0 0.0
    %263 = vmatpush1.msra.mxu0 0.0
    %264 = vmatprep.subr.mxu0 0.0
    %265 = vmatpush1.msra.mxu0 0.0
    %266 = vmatprep.subr.mxu0 0.0
    %267 = vmatpush1.msra.mxu0 %v229
    %268 = vmatprep.subr.mxu0 0.0
    %269 = vmatpush2.msra.mxu0 0.0
    %270 = vmatprep.subr.mxu0 0.0
    %271 = vmatpush2.msra.mxu0 0.0
    %272 = vmatprep.subr.mxu0 0.0
    %273 = vmatpush2.msra.mxu0 0.0
    %274 = vmatprep.subr.mxu0 0.0
    %275 = vmatpush2.msra.mxu0 0.0
    %276 = vmatprep.subr.mxu0 0.0
    %277 = vmatpush2.msra.mxu0 0.0
    %278 = vmatprep.subr.mxu0 0.0
    %279 = vmatpush2.msra.mxu0 0.0
    %280 = vmatprep.subr.mxu0 0.0
    %281 = vmatpush2.msra.mxu0 0.0
    %282 = vmatprep.subr.mxu0 0.0
    %283 = vmatpush2.msra.mxu0 0.0
    %284 = vmatprep.subr.mxu0 0.0
    %285 = vmatpush2.msra.mxu0 0.0
    %286 = vmatprep.subr.mxu0 0.0
    %287 = vmatpush2.msra.mxu0 0.0
    %288 = vmatprep.subr.mxu0 0.0
    %289 = vmatpush2.msra.mxu0 0.0
    %290 = vmatprep.subr.mxu0 0.0
    %291 = vmatpush2.msra.mxu0 0.0
    %292 = vmatprep.subr.mxu0 0.0
    %293 = vmatpush2.msra.mxu0 0.0
    %294 = vmatprep.subr.mxu0 0.0
    %295 = vmatpush2.msra.mxu0 0.0
    %296 = vmatprep.subr.mxu0 0.0
    %297 = vmatpush2.msra.mxu0 0.0
    %298 = vmatprep.subr.mxu0 0.0
    %299 = vmatpush2.msra.mxu0 0.0
    %300 = vmatprep.mubr.f32.mxu0 0.0
    %301 = vmatmul.mubr.f32.gmra.mxu0 %v231
    %v302 = vpop.f32.mrf.mxu0
    %v303 = vadd.f32 0.0, %v302
    %v304 = vpop.f32.mrf.mxu0
    %305 = vmatprep.mubr.f32.mxu0 0.0
    %306 = vmatmul.mubr.f32.gmra.mxu0 %v234
    %v307 = vpop.f32.mrf.mxu0
    %v308 = vadd.f32 0.0, %v307
    %v309 = vpop.f32.mrf.mxu0
    %310 = vdwg.mxu0
    %v312 = vsel %vm145, %v141, 0
    %v315 = vsel %vm145, %v142, 0
    %317 = vmatprep.subr.mxu0 0.0
    %318 = vmatpush1.msra.mxu0 0.0
    %319 = vmatprep.subr.mxu0 0.0
    %320 = vmatpush1.msra.mxu0 0.0
    %321 = vmatprep.subr.mxu0 0.0
    %322 = vmatpush1.msra.mxu0 0.0
    %323 = vmatprep.subr.mxu0 0.0
    %324 = vmatpush1.msra.mxu0 0.0
    %325 = vmatprep.subr.mxu0 0.0
    %326 = vmatpush1.msra.mxu0 0.0
    %327 = vmatprep.subr.mxu0 0.0
    %328 = vmatpush1.msra.mxu0 0.0
    %329 = vmatprep.subr.mxu0 0.0
    %330 = vmatpush1.msra.mxu0 0.0
    %331 = vmatprep.subr.mxu0 0.0
    %332 = vmatpush1.msra.mxu0 0.0
    %333 = vmatprep.subr.mxu0 0.0
    %334 = vmatpush1.msra.mxu0 0.0
    %335 = vmatprep.subr.mxu0 0.0
    %336 = vmatpush1.msra.mxu0 0.0
    %337 = vmatprep.subr.mxu0 0.0
    %338 = vmatpush1.msra.mxu0 0.0
    %339 = vmatprep.subr.mxu0 0.0
    %340 = vmatpush1.msra.mxu0 0.0
    %341 = vmatprep.subr.mxu0 0.0
    %342 = vmatpush1.msra.mxu0 0.0
    %343 = vmatprep.subr.mxu0 0.0
    %344 = vmatpush1.msra.mxu0 0.0
    %345 = vmatprep.subr.mxu0 0.0
    %346 = vmatpush1.msra.mxu0 %v228
    %347 = vmatprep.subr.mxu0 0.0
    %348 = vmatpush1.msra.mxu0 %v227
    %349 = vmatprep.subr.mxu0 0.0
    %350 = vmatpush2.msra.mxu0 0.0
    %351 = vmatprep.subr.mxu0 0.0
    %352 = vmatpush2.msra.mxu0 0.0
    %353 = vmatprep.subr.mxu0 0.0
    %354 = vmatpush2.msra.mxu0 0.0
    %355 = vmatprep.subr.mxu0 0.0
    %356 = vmatpush2.msra.mxu0 0.0
    %357 = vmatprep.subr.mxu0 0.0
    %358 = vmatpush2.msra.mxu0 0.0
    %359 = vmatprep.subr.mxu0 0.0
    %360 = vmatpush2.msra.mxu0 0.0
    %361 = vmatprep.subr.mxu0 0.0
    %362 = vmatpush2.msra.mxu0 0.0
    %363 = vmatprep.subr.mxu0 0.0
    %364 = vmatpush2.msra.mxu0 0.0
    %365 = vmatprep.subr.mxu0 0.0
    %366 = vmatpush2.msra.mxu0 0.0
    %367 = vmatprep.subr.mxu0 0.0
    %368 = vmatpush2.msra.mxu0 0.0
    %369 = vmatprep.subr.mxu0 0.0
    %370 = vmatpush2.msra.mxu0 0.0
    %371 = vmatprep.subr.mxu0 0.0
    %372 = vmatpush2.msra.mxu0 0.0
    %373 = vmatprep.subr.mxu0 0.0
    %374 = vmatpush2.msra.mxu0 0.0
    %375 = vmatprep.subr.mxu0 0.0
    %376 = vmatpush2.msra.mxu0 0.0
    %377 = vmatprep.subr.mxu0 0.0
    %378 = vmatpush2.msra.mxu0 0.0
    %379 = vmatprep.subr.mxu0 0.0
    %380 = vmatpush2.msra.mxu0 0.0
    %381 = vmatprep.mubr.f32.mxu0 0.0
    %382 = vmatmul.mubr.f32.gmra.mxu0 %v312
    %v383 = vpop.f32.mrf.mxu0
    %v384 = vadd.f32 %v303, %v383
    %v385 = vpop.f32.mrf.mxu0
    %386 = vmatprep.mubr.f32.mxu0 0.0
    %387 = vmatmul.mubr.f32.gmra.mxu0 %v315
    %v388 = vpop.f32.mrf.mxu0
    %v389 = vadd.f32 %v308, %v388
    %v390 = vpop.f32.mrf.mxu0
    %391 = vdwg.mxu0
    %v392 = vld [vmem:[#allocation2 + $0x38] sm:$0x1]
    %v393 = vlaneseq
    %v394 = vshrl.u32 %v393, 7
    %v395 = vsub.s32 0, %v394
    %v396 = vrot.slane %v392, %v395
    %v397 = vadd.f32 %v384, %v396
    %v398 = vadd.f32 %v389, %v396
    %v399 = vmax.f32 %v397, 0.0
    %v400 = vmax.f32 %v398, 0.0
    %v402 = vsel %vm145, %v50, 0
    %404 = vmatprep.subr.mxu0 0.0
    %405 = vmatpush1.msra.mxu0 0.0
    %406 = vmatprep.subr.mxu0 0.0
    %407 = vmatpush1.msra.mxu0 0.0
    %408 = vmatprep.subr.mxu0 0.0
    %409 = vmatpush1.msra.mxu0 0.0
    %410 = vmatprep.subr.mxu0 0.0
    %411 = vmatpush1.msra.mxu0 0.0
    %412 = vmatprep.subr.mxu0 0.0
    %413 = vmatpush1.msra.mxu0 0.0
    %414 = vmatprep.subr.mxu0 0.0
    %415 = vmatpush1.msra.mxu0 0.0
    %416 = vmatprep.subr.mxu0 0.0
    %417 = vmatpush1.msra.mxu0 0.0
    %418 = vmatprep.subr.mxu0 0.0
    %419 = vmatpush1.msra.mxu0 0.0
    %420 = vmatprep.subr.mxu0 0.0
    %421 = vmatpush1.msra.mxu0 0.0
    %422 = vmatprep.subr.mxu0 0.0
    %423 = vmatpush1.msra.mxu0 0.0
    %424 = vmatprep.subr.mxu0 0.0
    %425 = vmatpush1.msra.mxu0 0.0
    %426 = vmatprep.subr.mxu0 0.0
    %427 = vmatpush1.msra.mxu0 0.0
    %428 = vmatprep.subr.mxu0 0.0
    %429 = vmatpush1.msra.mxu0 0.0
    %430 = vmatprep.subr.mxu0 0.0
    %431 = vmatpush1.msra.mxu0 0.0
    %432 = vmatprep.subr.mxu0 0.0
    %433 = vmatpush1.msra.mxu0 %v400
    %434 = vmatprep.subr.mxu0 0.0
    %435 = vmatpush1.msra.mxu0 %v399
    %436 = vmatprep.subr.mxu0 0.0
    %437 = vmatpush2.msra.mxu0 0.0
    %438 = vmatprep.subr.mxu0 0.0
    %439 = vmatpush2.msra.mxu0 0.0
    %440 = vmatprep.subr.mxu0 0.0
    %441 = vmatpush2.msra.mxu0 0.0
    %442 = vmatprep.subr.mxu0 0.0
    %443 = vmatpush2.msra.mxu0 0.0
    %444 = vmatprep.subr.mxu0 0.0
    %445 = vmatpush2.msra.mxu0 0.0
    %446 = vmatprep.subr.mxu0 0.0
    %447 = vmatpush2.msra.mxu0 0.0
    %448 = vmatprep.subr.mxu0 0.0
    %449 = vmatpush2.msra.mxu0 0.0
    %450 = vmatprep.subr.mxu0 0.0
    %451 = vmatpush2.msra.mxu0 0.0
    %452 = vmatprep.subr.mxu0 0.0
    %453 = vmatpush2.msra.mxu0 0.0
    %454 = vmatprep.subr.mxu0 0.0
    %455 = vmatpush2.msra.mxu0 0.0
    %456 = vmatprep.subr.mxu0 0.0
    %457 = vmatpush2.msra.mxu0 0.0
    %458 = vmatprep.subr.mxu0 0.0
    %459 = vmatpush2.msra.mxu0 0.0
    %460 = vmatprep.subr.mxu0 0.0
    %461 = vmatpush2.msra.mxu0 0.0
    %462 = vmatprep.subr.mxu0 0.0
    %463 = vmatpush2.msra.mxu0 0.0
    %464 = vmatprep.subr.mxu0 0.0
    %465 = vmatpush2.msra.mxu0 0.0
    %466 = vmatprep.subr.mxu0 0.0
    %467 = vmatpush2.msra.mxu0 0.0
    %468 = vmatprep.mubr.f32.mxu0 0.0
    %469 = vmatmul.mubr.f32.gmra.mxu0 %v402
    %v470 = vpop.f32.mrf.mxu0
    %v471 = vadd.f32 0.0, %v470
    %v472 = vpop.f32.mrf.mxu0
    %473 = vdwg.mxu0
    %vm474 = vcmask 15360
    %v476 = vsel %vm474, %v51, 0
    %v479 = vsel %vm474, %v52, 0
    %vm481 = vcmask 1041408
    %v483 = vsel %vm481, %v471, 0
    %485 = vmatprep.subr.mxu0 0.0
    %486 = vmatpush1.msra.mxu0 0.0
    %487 = vmatprep.subr.mxu0 0.0
    %488 = vmatpush1.msra.mxu0 0.0
    %489 = vmatprep.subr.mxu0 0.0
    %490 = vmatpush1.msra.mxu0 0.0
    %491 = vmatprep.subr.mxu0 0.0
    %492 = vmatpush1.msra.mxu0 0.0
    %493 = vmatprep.subr.mxu0 0.0
    %494 = vmatpush1.msra.mxu0 0.0
    %495 = vmatprep.subr.mxu0 0.0
    %496 = vmatpush1.msra.mxu0 0.0
    %497 = vmatprep.subr.mxu0 0.0
    %498 = vmatpush1.msra.mxu0 0.0
    %499 = vmatprep.subr.mxu0 0.0
    %500 = vmatpush1.msra.mxu0 0.0
    %501 = vmatprep.subr.mxu0 0.0
    %502 = vmatpush1.msra.mxu0 0.0
    %503 = vmatprep.subr.mxu0 0.0
    %504 = vmatpush1.msra.mxu0 0.0
    %505 = vmatprep.subr.mxu0 0.0
    %506 = vmatpush1.msra.mxu0 0.0
    %507 = vmatprep.subr.mxu0 0.0
    %508 = vmatpush1.msra.mxu0 0.0
    %509 = vmatprep.subr.mxu0 0.0
    %510 = vmatpush1.msra.mxu0 0.0
    %511 = vmatprep.subr.mxu0 0.0
    %512 = vmatpush1.msra.mxu0 0.0
    %513 = vmatprep.subr.mxu0 0.0
    %514 = vmatpush1.msra.mxu0 0.0
    %515 = vmatprep.subr.mxu0 0.0
    %516 = vmatpush1.msra.mxu0 %v483
    %517 = vmatprep.subr.mxu0 0.0
    %518 = vmatpush2.msra.mxu0 0.0
    %519 = vmatprep.subr.mxu0 0.0
    %520 = vmatpush2.msra.mxu0 0.0
    %521 = vmatprep.subr.mxu0 0.0
    %522 = vmatpush2.msra.mxu0 0.0
    %523 = vmatprep.subr.mxu0 0.0
    %524 = vmatpush2.msra.mxu0 0.0
    %525 = vmatprep.subr.mxu0 0.0
    %526 = vmatpush2.msra.mxu0 0.0
    %527 = vmatprep.subr.mxu0 0.0
    %528 = vmatpush2.msra.mxu0 0.0
    %529 = vmatprep.subr.mxu0 0.0
    %530 = vmatpush2.msra.mxu0 0.0
    %531 = vmatprep.subr.mxu0 0.0
    %532 = vmatpush2.msra.mxu0 0.0
    %533 = vmatprep.subr.mxu0 0.0
    %534 = vmatpush2.msra.mxu0 0.0
    %535 = vmatprep.subr.mxu0 0.0
    %536 = vmatpush2.msra.mxu0 0.0
    %537 = vmatprep.subr.mxu0 0.0
    %538 = vmatpush2.msra.mxu0 0.0
    %539 = vmatprep.subr.mxu0 0.0
    %540 = vmatpush2.msra.mxu0 0.0
    %541 = vmatprep.subr.mxu0 0.0
    %542 = vmatpush2.msra.mxu0 0.0
    %543 = vmatprep.subr.mxu0 0.0
    %544 = vmatpush2.msra.mxu0 0.0
    %545 = vmatprep.subr.mxu0 0.0
    %546 = vmatpush2.msra.mxu0 0.0
    %547 = vmatprep.subr.mxu0 0.0
    %548 = vmatpush2.msra.mxu0 0.0
    %549 = vmatprep.mubr.f32.mxu0 0.0
    %550 = vmatmul.mubr.f32.gmra.mxu0 %v476
    %v551 = vpop.f32.mrf.mxu0
    %v552 = vadd.f32 0.0, %v551
    %v553 = vpop.f32.mrf.mxu0
    %554 = vmatprep.mubr.f32.mxu0 0.0
    %555 = vmatmul.mubr.f32.gmra.mxu0 %v479
    %v556 = vpop.f32.mrf.mxu0
    %v557 = vadd.f32 0.0, %v556
    %v558 = vpop.f32.mrf.mxu0
    %559 = vdwg.mxu0
    %v560 = vld [vmem:[#allocation2 + $0x40] sm:$0xff]
    %v561 = vld [vmem:[#allocation2 + $0x48] sm:$0x1]
    %v562 = vlaneseq
    %v563 = vshrl.u32 %v562, 7
    %v564 = vsub.s32 0, %v563
    %v565 = vrot.slane %v561, %v564
    %566 = vmatprep.subr.mxu0 0.0
    %567 = vmatpush1.msra.mxu0 0.0
    %568 = vmatprep.subr.mxu0 0.0
    %569 = vmatpush1.msra.mxu0 0.0
    %570 = vmatprep.subr.mxu0 0.0
    %571 = vmatpush1.msra.mxu0 0.0
    %572 = vmatprep.subr.mxu0 0.0
    %573 = vmatpush1.msra.mxu0 0.0
    %574 = vmatprep.subr.mxu0 0.0
    %575 = vmatpush1.msra.mxu0 0.0
    %576 = vmatprep.subr.mxu0 0.0
    %577 = vmatpush1.msra.mxu0 0.0
    %578 = vmatprep.subr.mxu0 0.0
    %579 = vmatpush1.msra.mxu0 0.0
    %580 = vmatprep.subr.mxu0 0.0
    %581 = vmatpush1.msra.mxu0 0.0
    %582 = vmatprep.subr.mxu0 0.0
    %583 = vmatpush1.msra.mxu0 0.0
    %584 = vmatprep.subr.mxu0 0.0
    %585 = vmatpush1.msra.mxu0 0.0
    %586 = vmatprep.subr.mxu0 0.0
    %587 = vmatpush1.msra.mxu0 0.0
    %588 = vmatprep.subr.mxu0 0.0
    %589 = vmatpush1.msra.mxu0 0.0
    %590 = vmatprep.subr.mxu0 0.0
    %591 = vmatpush1.msra.mxu0 0.0
    %592 = vmatprep.subr.mxu0 0.0
    %593 = vmatpush1.msra.mxu0 0.0
    %594 = vmatprep.subr.mxu0 0.0
    %595 = vmatpush1.msra.mxu0 0.0
    %596 = vmatprep.subr.mxu0 0.0
    %597 = vmatpush1.msra.mxu0 %v560
    %598 = vmatprep.subr.mxu0 0.0
    %599 = vmatpush2.msra.mxu0 0.0
    %600 = vmatprep.subr.mxu0 0.0
    %601 = vmatpush2.msra.mxu0 0.0
    %602 = vmatprep.subr.mxu0 0.0
    %603 = vmatpush2.msra.mxu0 0.0
    %604 = vmatprep.subr.mxu0 0.0
    %605 = vmatpush2.msra.mxu0 0.0
    %606 = vmatprep.subr.mxu0 0.0
    %607 = vmatpush2.msra.mxu0 0.0
    %608 = vmatprep.subr.mxu0 0.0
    %609 = vmatpush2.msra.mxu0 0.0
    %610 = vmatprep.subr.mxu0 0.0
    %611 = vmatpush2.msra.mxu0 0.0
    %612 = vmatprep.subr.mxu0 0.0
    %613 = vmatpush2.msra.mxu0 0.0
    %614 = vmatprep.subr.mxu0 0.0
    %615 = vmatpush2.msra.mxu0 0.0
    %616 = vmatprep.subr.mxu0 0.0
    %617 = vmatpush2.msra.mxu0 0.0
    %618 = vmatprep.subr.mxu0 0.0
    %619 = vmatpush2.msra.mxu0 0.0
    %620 = vmatprep.subr.mxu0 0.0
    %621 = vmatpush2.msra.mxu0 0.0
    %622 = vmatprep.subr.mxu0 0.0
    %623 = vmatpush2.msra.mxu0 0.0
    %624 = vmatprep.subr.mxu0 0.0
    %625 = vmatpush2.msra.mxu0 0.0
    %626 = vmatprep.subr.mxu0 0.0
    %627 = vmatpush2.msra.mxu0 0.0
    %628 = vmatprep.subr.mxu0 0.0
    %629 = vmatpush2.msra.mxu0 0.0
    %630 = vmatprep.mubr.f32.mxu0 0.0
    %631 = vmatmul.mubr.f32.gmra.mxu0 %v61
    %v632 = vpop.f32.mrf.mxu0
    %v633 = vadd.f32 %v565, %v632
    %v634 = vpop.f32.mrf.mxu0
    %635 = vmatprep.mubr.f32.mxu0 0.0
    %636 = vmatmul.mubr.f32.gmra.mxu0 %v64
    %v637 = vpop.f32.mrf.mxu0
    %v638 = vadd.f32 %v565, %v637
    %v639 = vpop.f32.mrf.mxu0
    %640 = vdwg.mxu0
    %v641 = vmax.f32 %v633, 0.0
    %v642 = vmax.f32 %v638, 0.0
    %v643 = vld [vmem:[#allocation2 + $0x50] sm:$0xff]
    %v644 = vld [vmem:[#allocation2 + $0x58] sm:$0xff]
    %645 = vmatprep.subr.mxu0 0.0
    %646 = vmatpush1.msra.mxu0 0.0
    %647 = vmatprep.subr.mxu0 0.0
    %648 = vmatpush1.msra.mxu0 0.0
    %649 = vmatprep.subr.mxu0 0.0
    %650 = vmatpush1.msra.mxu0 0.0
    %651 = vmatprep.subr.mxu0 0.0
    %652 = vmatpush1.msra.mxu0 0.0
    %653 = vmatprep.subr.mxu0 0.0
    %654 = vmatpush1.msra.mxu0 0.0
    %655 = vmatprep.subr.mxu0 0.0
    %656 = vmatpush1.msra.mxu0 0.0
    %657 = vmatprep.subr.mxu0 0.0
    %658 = vmatpush1.msra.mxu0 0.0
    %659 = vmatprep.subr.mxu0 0.0
    %660 = vmatpush1.msra.mxu0 0.0
    %661 = vmatprep.subr.mxu0 0.0
    %662 = vmatpush1.msra.mxu0 0.0
    %663 = vmatprep.subr.mxu0 0.0
    %664 = vmatpush1.msra.mxu0 0.0
    %665 = vmatprep.subr.mxu0 0.0
    %666 = vmatpush1.msra.mxu0 0.0
    %667 = vmatprep.subr.mxu0 0.0
    %668 = vmatpush1.msra.mxu0 0.0
    %669 = vmatprep.subr.mxu0 0.0
    %670 = vmatpush1.msra.mxu0 0.0
    %671 = vmatprep.subr.mxu0 0.0
    %672 = vmatpush1.msra.mxu0 0.0
    %673 = vmatprep.subr.mxu0 0.0
    %674 = vmatpush1.msra.mxu0 %v644
    %675 = vmatprep.subr.mxu0 0.0
    %676 = vmatpush1.msra.mxu0 %v643
    %677 = vmatprep.subr.mxu0 0.0
    %678 = vmatpush2.msra.mxu0 0.0
    %679 = vmatprep.subr.mxu0 0.0
    %680 = vmatpush2.msra.mxu0 0.0
    %681 = vmatprep.subr.mxu0 0.0
    %682 = vmatpush2.msra.mxu0 0.0
    %683 = vmatprep.subr.mxu0 0.0
    %684 = vmatpush2.msra.mxu0 0.0
    %685 = vmatprep.subr.mxu0 0.0
    %686 = vmatpush2.msra.mxu0 0.0
    %687 = vmatprep.subr.mxu0 0.0
    %688 = vmatpush2.msra.mxu0 0.0
    %689 = vmatprep.subr.mxu0 0.0
    %690 = vmatpush2.msra.mxu0 0.0
    %691 = vmatprep.subr.mxu0 0.0
    %692 = vmatpush2.msra.mxu0 0.0
    %693 = vmatprep.subr.mxu0 0.0
    %694 = vmatpush2.msra.mxu0 0.0
    %695 = vmatprep.subr.mxu0 0.0
    %696 = vmatpush2.msra.mxu0 0.0
    %697 = vmatprep.subr.mxu0 0.0
    %698 = vmatpush2.msra.mxu0 0.0
    %699 = vmatprep.subr.mxu0 0.0
    %700 = vmatpush2.msra.mxu0 0.0
    %701 = vmatprep.subr.mxu0 0.0
    %702 = vmatpush2.msra.mxu0 0.0
    %703 = vmatprep.subr.mxu0 0.0
    %704 = vmatpush2.msra.mxu0 0.0
    %705 = vmatprep.subr.mxu0 0.0
    %706 = vmatpush2.msra.mxu0 0.0
    %707 = vmatprep.subr.mxu0 0.0
    %708 = vmatpush2.msra.mxu0 0.0
    %709 = vmatprep.mubr.f32.mxu0 0.0
    %710 = vmatmul.mubr.f32.gmra.mxu0 %v147
    %v711 = vpop.f32.mrf.mxu0
    %v712 = vadd.f32 0.0, %v711
    %v713 = vpop.f32.mrf.mxu0
    %714 = vmatprep.mubr.f32.mxu0 0.0
    %715 = vmatmul.mubr.f32.gmra.mxu0 %v150
    %v716 = vpop.f32.mrf.mxu0
    %v717 = vadd.f32 0.0, %v716
    %v718 = vpop.f32.mrf.mxu0
    %719 = vdwg.mxu0
    %v720 = vld [vmem:[#allocation2 + $0x60] sm:$0xff]
    %v721 = vld [vmem:[#allocation2 + $0x68] sm:$0xff]
    %v722 = vld [vmem:[#allocation2 + $0x70] sm:$0xff]
    %v724 = vsel %vm59, %v712, 0
    %v727 = vsel %vm59, %v717, 0
    %729 = vmatprep.subr.mxu0 0.0
    %730 = vmatpush1.msra.mxu0 0.0
    %731 = vmatprep.subr.mxu0 0.0
    %732 = vmatpush1.msra.mxu0 0.0
    %733 = vmatprep.subr.mxu0 0.0
    %734 = vmatpush1.msra.mxu0 0.0
    %735 = vmatprep.subr.mxu0 0.0
    %736 = vmatpush1.msra.mxu0 0.0
    %737 = vmatprep.subr.mxu0 0.0
    %738 = vmatpush1.msra.mxu0 0.0
    %739 = vmatprep.subr.mxu0 0.0
    %740 = vmatpush1.msra.mxu0 0.0
    %741 = vmatprep.subr.mxu0 0.0
    %742 = vmatpush1.msra.mxu0 0.0
    %743 = vmatprep.subr.mxu0 0.0
    %744 = vmatpush1.msra.mxu0 0.0
    %745 = vmatprep.subr.mxu0 0.0
    %746 = vmatpush1.msra.mxu0 0.0
    %747 = vmatprep.subr.mxu0 0.0
    %748 = vmatpush1.msra.mxu0 0.0
    %749 = vmatprep.subr.mxu0 0.0
    %750 = vmatpush1.msra.mxu0 0.0
    %751 = vmatprep.subr.mxu0 0.0
    %752 = vmatpush1.msra.mxu0 0.0
    %753 = vmatprep.subr.mxu0 0.0
    %754 = vmatpush1.msra.mxu0 0.0
    %755 = vmatprep.subr.mxu0 0.0
    %756 = vmatpush1.msra.mxu0 0.0
    %757 = vmatprep.subr.mxu0 0.0
    %758 = vmatpush1.msra.mxu0 0.0
    %759 = vmatprep.subr.mxu0 0.0
    %760 = vmatpush1.msra.mxu0 %v722
    %761 = vmatprep.subr.mxu0 0.0
    %762 = vmatpush2.msra.mxu0 0.0
    %763 = vmatprep.subr.mxu0 0.0
    %764 = vmatpush2.msra.mxu0 0.0
    %765 = vmatprep.subr.mxu0 0.0
    %766 = vmatpush2.msra.mxu0 0.0
    %767 = vmatprep.subr.mxu0 0.0
    %768 = vmatpush2.msra.mxu0 0.0
    %769 = vmatprep.subr.mxu0 0.0
    %770 = vmatpush2.msra.mxu0 0.0
    %771 = vmatprep.subr.mxu0 0.0
    %772 = vmatpush2.msra.mxu0 0.0
    %773 = vmatprep.subr.mxu0 0.0
    %774 = vmatpush2.msra.mxu0 0.0
    %775 = vmatprep.subr.mxu0 0.0
    %776 = vmatpush2.msra.mxu0 0.0
    %777 = vmatprep.subr.mxu0 0.0
    %778 = vmatpush2.msra.mxu0 0.0
    %779 = vmatprep.subr.mxu0 0.0
    %780 = vmatpush2.msra.mxu0 0.0
    %781 = vmatprep.subr.mxu0 0.0
    %782 = vmatpush2.msra.mxu0 0.0
    %783 = vmatprep.subr.mxu0 0.0
    %784 = vmatpush2.msra.mxu0 0.0
    %785 = vmatprep.subr.mxu0 0.0
    %786 = vmatpush2.msra.mxu0 0.0
    %787 = vmatprep.subr.mxu0 0.0
    %788 = vmatpush2.msra.mxu0 0.0
    %789 = vmatprep.subr.mxu0 0.0
    %790 = vmatpush2.msra.mxu0 0.0
    %791 = vmatprep.subr.mxu0 0.0
    %792 = vmatpush2.msra.mxu0 0.0
    %793 = vmatprep.mubr.f32.mxu0 0.0
    %794 = vmatmul.mubr.f32.gmra.mxu0 %v724
    %v795 = vpop.f32.mrf.mxu0
    %v796 = vadd.f32 0.0, %v795
    %v797 = vpop.f32.mrf.mxu0
    %798 = vmatprep.mubr.f32.mxu0 0.0
    %799 = vmatmul.mubr.f32.gmra.mxu0 %v727
    %v800 = vpop.f32.mrf.mxu0
    %v801 = vadd.f32 0.0, %v800
    %v802 = vpop.f32.mrf.mxu0
    %803 = vdwg.mxu0
    %v805 = vsel %vm145, %v641, 0
    %v808 = vsel %vm145, %v642, 0
    %810 = vmatprep.subr.mxu0 0.0
    %811 = vmatpush1.msra.mxu0 0.0
    %812 = vmatprep.subr.mxu0 0.0
    %813 = vmatpush1.msra.mxu0 0.0
    %814 = vmatprep.subr.mxu0 0.0
    %815 = vmatpush1.msra.mxu0 0.0
    %816 = vmatprep.subr.mxu0 0.0
    %817 = vmatpush1.msra.mxu0 0.0
    %818 = vmatprep.subr.mxu0 0.0
    %819 = vmatpush1.msra.mxu0 0.0
    %820 = vmatprep.subr.mxu0 0.0
    %821 = vmatpush1.msra.mxu0 0.0
    %822 = vmatprep.subr.mxu0 0.0
    %823 = vmatpush1.msra.mxu0 0.0
    %824 = vmatprep.subr.mxu0 0.0
    %825 = vmatpush1.msra.mxu0 0.0
    %826 = vmatprep.subr.mxu0 0.0
    %827 = vmatpush1.msra.mxu0 0.0
    %828 = vmatprep.subr.mxu0 0.0
    %829 = vmatpush1.msra.mxu0 0.0
    %830 = vmatprep.subr.mxu0 0.0
    %831 = vmatpush1.msra.mxu0 0.0
    %832 = vmatprep.subr.mxu0 0.0
    %833 = vmatpush1.msra.mxu0 0.0
    %834 = vmatprep.subr.mxu0 0.0
    %835 = vmatpush1.msra.mxu0 0.0
    %836 = vmatprep.subr.mxu0 0.0
    %837 = vmatpush1.msra.mxu0 0.0
    %838 = vmatprep.subr.mxu0 0.0
    %839 = vmatpush1.msra.mxu0 %v721
    %840 = vmatprep.subr.mxu0 0.0
    %841 = vmatpush1.msra.mxu0 %v720
    %842 = vmatprep.subr.mxu0 0.0
    %843 = vmatpush2.msra.mxu0 0.0
    %844 = vmatprep.subr.mxu0 0.0
    %845 = vmatpush2.msra.mxu0 0.0
    %846 = vmatprep.subr.mxu0 0.0
    %847 = vmatpush2.msra.mxu0 0.0
    %848 = vmatprep.subr.mxu0 0.0
    %849 = vmatpush2.msra.mxu0 0.0
    %850 = vmatprep.subr.mxu0 0.0
    %851 = vmatpush2.msra.mxu0 0.0
    %852 = vmatprep.subr.mxu0 0.0
    %853 = vmatpush2.msra.mxu0 0.0
    %854 = vmatprep.subr.mxu0 0.0
    %855 = vmatpush2.msra.mxu0 0.0
    %856 = vmatprep.subr.mxu0 0.0
    %857 = vmatpush2.msra.mxu0 0.0
    %858 = vmatprep.subr.mxu0 0.0
    %859 = vmatpush2.msra.mxu0 0.0
    %860 = vmatprep.subr.mxu0 0.0
    %861 = vmatpush2.msra.mxu0 0.0
    %862 = vmatprep.subr.mxu0 0.0
    %863 = vmatpush2.msra.mxu0 0.0
    %864 = vmatprep.subr.mxu0 0.0
    %865 = vmatpush2.msra.mxu0 0.0
    %866 = vmatprep.subr.mxu0 0.0
    %867 = vmatpush2.msra.mxu0 0.0
    %868 = vmatprep.subr.mxu0 0.0
    %869 = vmatpush2.msra.mxu0 0.0
    %870 = vmatprep.subr.mxu0 0.0
    %871 = vmatpush2.msra.mxu0 0.0
    %872 = vmatprep.subr.mxu0 0.0
    %873 = vmatpush2.msra.mxu0 0.0
    %874 = vmatprep.mubr.f32.mxu0 0.0
    %875 = vmatmul.mubr.f32.gmra.mxu0 %v805
    %v876 = vpop.f32.mrf.mxu0
    %v877 = vadd.f32 %v796, %v876
    %v878 = vpop.f32.mrf.mxu0
    %879 = vmatprep.mubr.f32.mxu0 0.0
    %880 = vmatmul.mubr.f32.gmra.mxu0 %v808
    %v881 = vpop.f32.mrf.mxu0
    %v882 = vadd.f32 %v801, %v881
    %v883 = vpop.f32.mrf.mxu0
    %884 = vdwg.mxu0
    %v885 = vld [vmem:[#allocation2 + $0x78] sm:$0xff]
    %v886 = vld [vmem:[#allocation2 + $0x80] sm:$0xff]
    %v887 = vld [vmem:[#allocation2 + $0x88] sm:$0xff]
    %vm888 = vcmask 195584
    %v890 = vsel %vm888, %v552, 0
    %v893 = vsel %vm888, %v557, 0
    %895 = vmatprep.subr.mxu0 0.0
    %896 = vmatpush1.msra.mxu0 0.0
    %897 = vmatprep.subr.mxu0 0.0
    %898 = vmatpush1.msra.mxu0 0.0
    %899 = vmatprep.subr.mxu0 0.0
    %900 = vmatpush1.msra.mxu0 0.0
    %901 = vmatprep.subr.mxu0 0.0
    %902 = vmatpush1.msra.mxu0 0.0
    %903 = vmatprep.subr.mxu0 0.0
    %904 = vmatpush1.msra.mxu0 0.0
    %905 = vmatprep.subr.mxu0 0.0
    %906 = vmatpush1.msra.mxu0 0.0
    %907 = vmatprep.subr.mxu0 0.0
    %908 = vmatpush1.msra.mxu0 0.0
    %909 = vmatprep.subr.mxu0 0.0
    %910 = vmatpush1.msra.mxu0 0.0
    %911 = vmatprep.subr.mxu0 0.0
    %912 = vmatpush1.msra.mxu0 0.0
    %913 = vmatprep.subr.mxu0 0.0
    %914 = vmatpush1.msra.mxu0 0.0
    %915 = vmatprep.subr.mxu0 0.0
    %916 = vmatpush1.msra.mxu0 0.0
    %917 = vmatprep.subr.mxu0 0.0
    %918 = vmatpush1.msra.mxu0 0.0
    %919 = vmatprep.subr.mxu0 0.0
    %920 = vmatpush1.msra.mxu0 0.0
    %921 = vmatprep.subr.mxu0 0.0
    %922 = vmatpush1.msra.mxu0 %v887
    %923 = vmatprep.subr.mxu0 0.0
    %924 = vmatpush1.msra.mxu0 %v886
    %925 = vmatprep.subr.mxu0 0.0
    %926 = vmatpush1.msra.mxu0 %v885
    %927 = vmatprep.subr.mxu0 0.0
    %928 = vmatpush2.msra.mxu0 0.0
    %929 = vmatprep.subr.mxu0 0.0
    %930 = vmatpush2.msra.mxu0 0.0
    %931 = vmatprep.subr.mxu0 0.0
    %932 = vmatpush2.msra.mxu0 0.0
    %933 = vmatprep.subr.mxu0 0.0
    %934 = vmatpush2.msra.mxu0 0.0
    %935 = vmatprep.subr.mxu0 0.0
    %936 = vmatpush2.msra.mxu0 0.0
    %937 = vmatprep.subr.mxu0 0.0
    %938 = vmatpush2.msra.mxu0 0.0
    %939 = vmatprep.subr.mxu0 0.0
    %940 = vmatpush2.msra.mxu0 0.0
    %941 = vmatprep.subr.mxu0 0.0
    %942 = vmatpush2.msra.mxu0 0.0
    %943 = vmatprep.subr.mxu0 0.0
    %944 = vmatpush2.msra.mxu0 0.0
    %945 = vmatprep.subr.mxu0 0.0
    %946 = vmatpush2.msra.mxu0 0.0
    %947 = vmatprep.subr.mxu0 0.0
    %948 = vmatpush2.msra.mxu0 0.0
    %949 = vmatprep.subr.mxu0 0.0
    %950 = vmatpush2.msra.mxu0 0.0
    %951 = vmatprep.subr.mxu0 0.0
    %952 = vmatpush2.msra.mxu0 0.0
    %953 = vmatprep.subr.mxu0 0.0
    %954 = vmatpush2.msra.mxu0 0.0
    %955 = vmatprep.subr.mxu0 0.0
    %956 = vmatpush2.msra.mxu0 0.0
    %957 = vmatprep.subr.mxu0 0.0
    %958 = vmatpush2.msra.mxu0 0.0
    %959 = vmatprep.mubr.f32.mxu0 0.0
    %960 = vmatmul.mubr.f32.gmra.mxu0 %v890
    %v961 = vpop.f32.mrf.mxu0
    %v962 = vadd.f32 0.0, %v961
    %v963 = vpop.f32.mrf.mxu0
    %964 = vmatprep.mubr.f32.mxu0 0.0
    %965 = vmatmul.mubr.f32.gmra.mxu0 %v893
    %v966 = vpop.f32.mrf.mxu0
    %v967 = vadd.f32 0.0, %v966
    %v968 = vpop.f32.mrf.mxu0
    %969 = vdwg.mxu0
    %v970 = vadd.f32 %v877, %v962
    %v971 = vadd.f32 %v882, %v967
    %v972 = vld [vmem:[#allocation2 + $0x90] sm:$0x1]
    %v973 = vlaneseq
    %v974 = vshrl.u32 %v973, 7
    %v975 = vsub.s32 0, %v974
    %v976 = vrot.slane %v972, %v975
    %v977 = vadd.f32 %v970, %v976
    %v978 = vadd.f32 %v971, %v976
    %v979 = vmax.f32 %v977, 0.0
    %v980 = vmax.f32 %v978, 0.0
    %981 = vmatprep.subr.mxu0 0.0
    %982 = vmatpush1.msra.mxu0 0.0
    %983 = vmatprep.subr.mxu0 0.0
    %984 = vmatpush1.msra.mxu0 0.0
    %985 = vmatprep.subr.mxu0 0.0
    %986 = vmatpush1.msra.mxu0 0.0
    %987 = vmatprep.subr.mxu0 0.0
    %988 = vmatpush1.msra.mxu0 0.0
    %989 = vmatprep.subr.mxu0 0.0
    %990 = vmatpush1.msra.mxu0 0.0
    %991 = vmatprep.subr.mxu0 0.0
    %992 = vmatpush1.msra.mxu0 0.0
    %993 = vmatprep.subr.mxu0 0.0
    %994 = vmatpush1.msra.mxu0 0.0
    %995 = vmatprep.subr.mxu0 0.0
    %996 = vmatpush1.msra.mxu0 0.0
    %997 = vmatprep.subr.mxu0 0.0
    %998 = vmatpush1.msra.mxu0 0.0
    %999 = vmatprep.subr.mxu0 0.0
    %1000 = vmatpush1.msra.mxu0 0.0
    %1001 = vmatprep.subr.mxu0 0.0
    %1002 = vmatpush1.msra.mxu0 0.0
    %1003 = vmatprep.subr.mxu0 0.0
    %1004 = vmatpush1.msra.mxu0 0.0
    %1005 = vmatprep.subr.mxu0 0.0
    %1006 = vmatpush1.msra.mxu0 0.0
    %1007 = vmatprep.subr.mxu0 0.0
    %1008 = vmatpush1.msra.mxu0 0.0
    %1009 = vmatprep.subr.mxu0 0.0
    %1010 = vmatpush1.msra.mxu0 %v980
    %1011 = vmatprep.subr.mxu0 0.0
    %1012 = vmatpush1.msra.mxu0 %v979
    %1013 = vmatprep.subr.mxu0 0.0
    %1014 = vmatpush2.msra.mxu0 0.0
    %1015 = vmatprep.subr.mxu0 0.0
    %1016 = vmatpush2.msra.mxu0 0.0
    %1017 = vmatprep.subr.mxu0 0.0
    %1018 = vmatpush2.msra.mxu0 0.0
    %1019 = vmatprep.subr.mxu0 0.0
    %1020 = vmatpush2.msra.mxu0 0.0
    %1021 = vmatprep.subr.mxu0 0.0
    %1022 = vmatpush2.msra.mxu0 0.0
    %1023 = vmatprep.subr.mxu0 0.0
    %1024 = vmatpush2.msra.mxu0 0.0
    %1025 = vmatprep.subr.mxu0 0.0
    %1026 = vmatpush2.msra.mxu0 0.0
    %1027 = vmatprep.subr.mxu0 0.0
    %1028 = vmatpush2.msra.mxu0 0.0
    %1029 = vmatprep.subr.mxu0 0.0
    %1030 = vmatpush2.msra.mxu0 0.0
    %1031 = vmatprep.subr.mxu0 0.0
    %1032 = vmatpush2.msra.mxu0 0.0
    %1033 = vmatprep.subr.mxu0 0.0
    %1034 = vmatpush2.msra.mxu0 0.0
    %1035 = vmatprep.subr.mxu0 0.0
    %1036 = vmatpush2.msra.mxu0 0.0
    %1037 = vmatprep.subr.mxu0 0.0
    %1038 = vmatpush2.msra.mxu0 0.0
    %1039 = vmatprep.subr.mxu0 0.0
    %1040 = vmatpush2.msra.mxu0 0.0
    %1041 = vmatprep.subr.mxu0 0.0
    %1042 = vmatpush2.msra.mxu0 0.0
    %1043 = vmatprep.subr.mxu0 0.0
    %1044 = vmatpush2.msra.mxu0 0.0
    %1045 = vmatprep.mubr.f32.mxu0 0.0
    %1046 = vmatmul.mubr.f32.gmra.mxu0 %v402
    %v1047 = vpop.f32.mrf.mxu0
    %v1048 = vadd.f32 0.0, %v1047
    %v1049 = vpop.f32.mrf.mxu0
    %1050 = vdwg.mxu0
    %v1051 = vld [vmem:[#allocation2 + $0x98] sm:$0xff]
    %v1052 = vld [vmem:[#allocation2 + $0xa0] sm:$0x1]
    %v1053 = vlaneseq
    %v1054 = vshrl.u32 %v1053, 7
    %v1055 = vsub.s32 0, %v1054
    %v1056 = vrot.slane %v1052, %v1055
    %v1058 = vsel %vm59, %v33, 0
    %1060 = vmatprep.subr.mxu0 0.0
    %1061 = vmatpush1.msra.mxu0 0.0
    %1062 = vmatprep.subr.mxu0 0.0
    %1063 = vmatpush1.msra.mxu0 0.0
    %1064 = vmatprep.subr.mxu0 0.0
    %1065 = vmatpush1.msra.mxu0 0.0
    %1066 = vmatprep.subr.mxu0 0.0
    %1067 = vmatpush1.msra.mxu0 0.0
    %1068 = vmatprep.subr.mxu0 0.0
    %1069 = vmatpush1.msra.mxu0 0.0
    %1070 = vmatprep.subr.mxu0 0.0
    %1071 = vmatpush1.msra.mxu0 0.0
    %1072 = vmatprep.subr.mxu0 0.0
    %1073 = vmatpush1.msra.mxu0 0.0
    %1074 = vmatprep.subr.mxu0 0.0
    %1075 = vmatpush1.msra.mxu0 0.0
    %1076 = vmatprep.subr.mxu0 0.0
    %1077 = vmatpush1.msra.mxu0 0.0
    %1078 = vmatprep.subr.mxu0 0.0
    %1079 = vmatpush1.msra.mxu0 0.0
    %1080 = vmatprep.subr.mxu0 0.0
    %1081 = vmatpush1.msra.mxu0 0.0
    %1082 = vmatprep.subr.mxu0 0.0
    %1083 = vmatpush1.msra.mxu0 0.0
    %1084 = vmatprep.subr.mxu0 0.0
    %1085 = vmatpush1.msra.mxu0 0.0
    %1086 = vmatprep.subr.mxu0 0.0
    %1087 = vmatpush1.msra.mxu0 0.0
    %1088 = vmatprep.subr.mxu0 0.0
    %1089 = vmatpush1.msra.mxu0 0.0
    %1090 = vmatprep.subr.mxu0 0.0
    %1091 = vmatpush1.msra.mxu0 %v1051
    %1092 = vmatprep.subr.mxu0 0.0
    %1093 = vmatpush2.msra.mxu0 0.0
    %1094 = vmatprep.subr.mxu0 0.0
    %1095 = vmatpush2.msra.mxu0 0.0
    %1096 = vmatprep.subr.mxu0 0.0
    %1097 = vmatpush2.msra.mxu0 0.0
    %1098 = vmatprep.subr.mxu0 0.0
    %1099 = vmatpush2.msra.mxu0 0.0
    %1100 = vmatprep.subr.mxu0 0.0
    %1101 = vmatpush2.msra.mxu0 0.0
    %1102 = vmatprep.subr.mxu0 0.0
    %1103 = vmatpush2.msra.mxu0 0.0
    %1104 = vmatprep.subr.mxu0 0.0
    %1105 = vmatpush2.msra.mxu0 0.0
    %1106 = vmatprep.subr.mxu0 0.0
    %1107 = vmatpush2.msra.mxu0 0.0
    %1108 = vmatprep.subr.mxu0 0.0
    %1109 = vmatpush2.msra.mxu0 0.0
    %1110 = vmatprep.subr.mxu0 0.0
    %1111 = vmatpush2.msra.mxu0 0.0
    %1112 = vmatprep.subr.mxu0 0.0
    %1113 = vmatpush2.msra.mxu0 0.0
    %1114 = vmatprep.subr.mxu0 0.0
    %1115 = vmatpush2.msra.mxu0 0.0
    %1116 = vmatprep.subr.mxu0 0.0
    %1117 = vmatpush2.msra.mxu0 0.0
    %1118 = vmatprep.subr.mxu0 0.0
    %1119 = vmatpush2.msra.mxu0 0.0
    %1120 = vmatprep.subr.mxu0 0.0
    %1121 = vmatpush2.msra.mxu0 0.0
    %1122 = vmatprep.subr.mxu0 0.0
    %1123 = vmatpush2.msra.mxu0 0.0
    %1124 = vmatprep.mubr.f32.mxu0 0.0
    %1125 = vmatmul.mubr.f32.gmra.mxu0 %v1058
    %v1126 = vpop.f32.mrf.mxu0
    %v1127 = vadd.f32 %v1056, %v1126
    %v1128 = vpop.f32.mrf.mxu0
    %1129 = vdwg.mxu0
    %v1130 = vmax.f32 %v1127, 0.0
    %v1131 = vld [vmem:[#allocation2 + $0xa8] sm:$0xff]
    %v1132 = vld [vmem:[#allocation2 + $0xb0] sm:$0xff]
    %v1133 = vld [vmem:[#allocation2 + $0xb8] sm:$0xff]
    %v1134 = vld [vmem:[#allocation2 + $0xc0] sm:$0xff]
    %v1135 = vld [vmem:[#allocation2 + $0xc8] sm:$0xff]
    %v1136 = vld [vmem:[#allocation2 + $0xd0] sm:$0xff]
    %v1137 = vld [vmem:[#allocation2 + $0xd8] sm:$0xff]
    %v1138 = vld [vmem:[#allocation2 + $0xe0] sm:$0xff]
    %vm1139 = vcmask 392192
    %v1141 = vsel %vm1139, %v1048, 0
    %1143 = vmatprep.subr.mxu0 0.0
    %1144 = vmatpush1.msra.mxu0 0.0
    %1145 = vmatprep.subr.mxu0 0.0
    %1146 = vmatpush1.msra.mxu0 0.0
    %1147 = vmatprep.subr.mxu0 0.0
    %1148 = vmatpush1.msra.mxu0 0.0
    %1149 = vmatprep.subr.mxu0 0.0
    %1150 = vmatpush1.msra.mxu0 0.0
    %1151 = vmatprep.subr.mxu0 0.0
    %1152 = vmatpush1.msra.mxu0 0.0
    %1153 = vmatprep.subr.mxu0 0.0
    %1154 = vmatpush1.msra.mxu0 0.0
    %1155 = vmatprep.subr.mxu0 0.0
    %1156 = vmatpush1.msra.mxu0 0.0
    %1157 = vmatprep.subr.mxu0 0.0
    %1158 = vmatpush1.msra.mxu0 0.0
    %1159 = vmatprep.subr.mxu0 0.0
    %1160 = vmatpush1.msra.mxu0 0.0
    %1161 = vmatprep.subr.mxu0 0.0
    %1162 = vmatpush1.msra.mxu0 0.0
    %1163 = vmatprep.subr.mxu0 0.0
    %1164 = vmatpush1.msra.mxu0 %v1138
    %1165 = vmatprep.subr.mxu0 0.0
    %1166 = vmatpush1.msra.mxu0 %v1137
    %1167 = vmatprep.subr.mxu0 0.0
    %1168 = vmatpush1.msra.mxu0 %v1136
    %1169 = vmatprep.subr.mxu0 0.0
    %1170 = vmatpush1.msra.mxu0 %v1135
    %1171 = vmatprep.subr.mxu0 0.0
    %1172 = vmatpush1.msra.mxu0 %v1134
    %1173 = vmatprep.subr.mxu0 0.0
    %1174 = vmatpush1.msra.mxu0 %v1133
    %1175 = vmatprep.subr.mxu0 0.0
    %1176 = vmatpush2.msra.mxu0 0.0
    %1177 = vmatprep.subr.mxu0 0.0
    %1178 = vmatpush2.msra.mxu0 0.0
    %1179 = vmatprep.subr.mxu0 0.0
    %1180 = vmatpush2.msra.mxu0 0.0
    %1181 = vmatprep.subr.mxu0 0.0
    %1182 = vmatpush2.msra.mxu0 0.0
    %1183 = vmatprep.subr.mxu0 0.0
    %1184 = vmatpush2.msra.mxu0 0.0
    %1185 = vmatprep.subr.mxu0 0.0
    %1186 = vmatpush2.msra.mxu0 0.0
    %1187 = vmatprep.subr.mxu0 0.0
    %1188 = vmatpush2.msra.mxu0 0.0
    %1189 = vmatprep.subr.mxu0 0.0
    %1190 = vmatpush2.msra.mxu0 0.0
    %1191 = vmatprep.subr.mxu0 0.0
    %1192 = vmatpush2.msra.mxu0 0.0
    %1193 = vmatprep.subr.mxu0 0.0
    %1194 = vmatpush2.msra.mxu0 0.0
    %1195 = vmatprep.subr.mxu0 0.0
    %1196 = vmatpush2.msra.mxu0 0.0
    %1197 = vmatprep.subr.mxu0 0.0
    %1198 = vmatpush2.msra.mxu0 0.0
    %1199 = vmatprep.subr.mxu0 0.0
    %1200 = vmatpush2.msra.mxu0 0.0
    %1201 = vmatprep.subr.mxu0 0.0
    %1202 = vmatpush2.msra.mxu0 0.0
    %1203 = vmatprep.subr.mxu0 0.0
    %1204 = vmatpush2.msra.mxu0 0.0
    %1205 = vmatprep.subr.mxu0 0.0
    %1206 = vmatpush2.msra.mxu0 0.0
    %1207 = vmatprep.mubr.f32.mxu0 0.0
    %1208 = vmatmul.mubr.f32.gmra.mxu0 %v1141
    %v1209 = vpop.f32.mrf.mxu0
    %v1210 = vadd.f32 0.0, %v1209
    %v1211 = vpop.f32.mrf.mxu0
    %1212 = vdwg.mxu0
    %v1214 = vsel %vm145, %v1130, 0
    %1216 = vmatprep.subr.mxu0 0.0
    %1217 = vmatpush1.msra.mxu0 0.0
    %1218 = vmatprep.subr.mxu0 0.0
    %1219 = vmatpush1.msra.mxu0 0.0
    %1220 = vmatprep.subr.mxu0 0.0
    %1221 = vmatpush1.msra.mxu0 0.0
    %1222 = vmatprep.subr.mxu0 0.0
    %1223 = vmatpush1.msra.mxu0 0.0
    %1224 = vmatprep.subr.mxu0 0.0
    %1225 = vmatpush1.msra.mxu0 0.0
    %1226 = vmatprep.subr.mxu0 0.0
    %1227 = vmatpush1.msra.mxu0 0.0
    %1228 = vmatprep.subr.mxu0 0.0
    %1229 = vmatpush1.msra.mxu0 0.0
    %1230 = vmatprep.subr.mxu0 0.0
    %1231 = vmatpush1.msra.mxu0 0.0
    %1232 = vmatprep.subr.mxu0 0.0
    %1233 = vmatpush1.msra.mxu0 0.0
    %1234 = vmatprep.subr.mxu0 0.0
    %1235 = vmatpush1.msra.mxu0 0.0
    %1236 = vmatprep.subr.mxu0 0.0
    %1237 = vmatpush1.msra.mxu0 0.0
    %1238 = vmatprep.subr.mxu0 0.0
    %1239 = vmatpush1.msra.mxu0 0.0
    %1240 = vmatprep.subr.mxu0 0.0
    %1241 = vmatpush1.msra.mxu0 0.0
    %1242 = vmatprep.subr.mxu0 0.0
    %1243 = vmatpush1.msra.mxu0 0.0
    %1244 = vmatprep.subr.mxu0 0.0
    %1245 = vmatpush1.msra.mxu0 %v1132
    %1246 = vmatprep.subr.mxu0 0.0
    %1247 = vmatpush1.msra.mxu0 %v1131
    %1248 = vmatprep.subr.mxu0 0.0
    %1249 = vmatpush2.msra.mxu0 0.0
    %1250 = vmatprep.subr.mxu0 0.0
    %1251 = vmatpush2.msra.mxu0 0.0
    %1252 = vmatprep.subr.mxu0 0.0
    %1253 = vmatpush2.msra.mxu0 0.0
    %1254 = vmatprep.subr.mxu0 0.0
    %1255 = vmatpush2.msra.mxu0 0.0
    %1256 = vmatprep.subr.mxu0 0.0
    %1257 = vmatpush2.msra.mxu0 0.0
    %1258 = vmatprep.subr.mxu0 0.0
    %1259 = vmatpush2.msra.mxu0 0.0
    %1260 = vmatprep.subr.mxu0 0.0
    %1261 = vmatpush2.msra.mxu0 0.0
    %1262 = vmatprep.subr.mxu0 0.0
    %1263 = vmatpush2.msra.mxu0 0.0
    %1264 = vmatprep.subr.mxu0 0.0
    %1265 = vmatpush2.msra.mxu0 0.0
    %1266 = vmatprep.subr.mxu0 0.0
    %1267 = vmatpush2.msra.mxu0 0.0
    %1268 = vmatprep.subr.mxu0 0.0
    %1269 = vmatpush2.msra.mxu0 0.0
    %1270 = vmatprep.subr.mxu0 0.0
    %1271 = vmatpush2.msra.mxu0 0.0
    %1272 = vmatprep.subr.mxu0 0.0
    %1273 = vmatpush2.msra.mxu0 0.0
    %1274 = vmatprep.subr.mxu0 0.0
    %1275 = vmatpush2.msra.mxu0 0.0
    %1276 = vmatprep.subr.mxu0 0.0
    %1277 = vmatpush2.msra.mxu0 0.0
    %1278 = vmatprep.subr.mxu0 0.0
    %1279 = vmatpush2.msra.mxu0 0.0
    %1280 = vmatprep.mubr.f32.mxu0 0.0
    %1281 = vmatmul.mubr.f32.gmra.mxu0 %v1214
    %v1282 = vpop.f32.mrf.mxu0
    %v1283 = vadd.f32 %v1210, %v1282
    %v1284 = vpop.f32.mrf.mxu0
    %1285 = vdwg.mxu0
    %v1286 = vld [vmem:[#allocation2 + $0xe8] sm:$0x1]
    %v1287 = vlaneseq
    %v1288 = vshrl.u32 %v1287, 7
    %v1289 = vsub.s32 0, %v1288
    %v1290 = vrot.slane %v1286, %v1289
    %v1291 = vadd.f32 %v1283, %v1290
    %v1292 = vmax.f32 %v1291, 0.0
    %v1293 = vld [vmem:[#allocation2 + $0xf0] sm:$0xff]
    %v1294 = vld [vmem:[#allocation2 + $0xf8] sm:$0xff]
    %v1295 = vld [vmem:[#allocation2 + $0x100] sm:$0xff]
    %v1296 = vld [vmem:[#allocation2 + $0x108] sm:$0xff]
    %v1297 = vld [vmem:[#allocation2 + $0x110] sm:$0xff]
    %v1298 = vld [vmem:[#allocation2 + $0x118] sm:$0xff]
    %v1299 = vld [vmem:[#allocation2 + $0x120] sm:$0xff]
    %v1300 = vld [vmem:[#allocation2 + $0x128] sm:$0xff]
    %v1301 = vld [vmem:[#allocation2 + $0x130] sm:$0x1]
    %v1302 = vlaneseq
    %v1303 = vshrl.u32 %v1302, 7
    %v1304 = vsub.s32 0, %v1303
    %v1305 = vrot.slane %v1301, %v1304
    %vm1306 = vcmask 523264
    %v1308 = vsel %vm1306, %v1292, 0
    %1310 = vmatprep.subr.mxu0 0.0
    %1311 = vmatpush1.msra.mxu0 0.0
    %1312 = vmatprep.subr.mxu0 0.0
    %1313 = vmatpush1.msra.mxu0 0.0
    %1314 = vmatprep.subr.mxu0 0.0
    %1315 = vmatpush1.msra.mxu0 0.0
    %1316 = vmatprep.subr.mxu0 0.0
    %1317 = vmatpush1.msra.mxu0 0.0
    %1318 = vmatprep.subr.mxu0 0.0
    %1319 = vmatpush1.msra.mxu0 0.0
    %1320 = vmatprep.subr.mxu0 0.0
    %1321 = vmatpush1.msra.mxu0 0.0
    %1322 = vmatprep.subr.mxu0 0.0
    %1323 = vmatpush1.msra.mxu0 0.0
    %1324 = vmatprep.subr.mxu0 0.0
    %1325 = vmatpush1.msra.mxu0 0.0
    %1326 = vmatprep.subr.mxu0 0.0
    %1327 = vmatpush1.msra.mxu0 %v1300
    %1328 = vmatprep.subr.mxu0 0.0
    %1329 = vmatpush1.msra.mxu0 %v1299
    %1330 = vmatprep.subr.mxu0 0.0
    %1331 = vmatpush1.msra.mxu0 %v1298
    %1332 = vmatprep.subr.mxu0 0.0
    %1333 = vmatpush1.msra.mxu0 %v1297
    %1334 = vmatprep.subr.mxu0 0.0
    %1335 = vmatpush1.msra.mxu0 %v1296
    %1336 = vmatprep.subr.mxu0 0.0
    %1337 = vmatpush1.msra.mxu0 %v1295
    %1338 = vmatprep.subr.mxu0 0.0
    %1339 = vmatpush1.msra.mxu0 %v1294
    %1340 = vmatprep.subr.mxu0 0.0
    %1341 = vmatpush1.msra.mxu0 %v1293
    %1342 = vmatprep.subr.mxu0 0.0
    %1343 = vmatpush2.msra.mxu0 0.0
    %1344 = vmatprep.subr.mxu0 0.0
    %1345 = vmatpush2.msra.mxu0 0.0
    %1346 = vmatprep.subr.mxu0 0.0
    %1347 = vmatpush2.msra.mxu0 0.0
    %1348 = vmatprep.subr.mxu0 0.0
    %1349 = vmatpush2.msra.mxu0 0.0
    %1350 = vmatprep.subr.mxu0 0.0
    %1351 = vmatpush2.msra.mxu0 0.0
    %1352 = vmatprep.subr.mxu0 0.0
    %1353 = vmatpush2.msra.mxu0 0.0
    %1354 = vmatprep.subr.mxu0 0.0
    %1355 = vmatpush2.msra.mxu0 0.0
    %1356 = vmatprep.subr.mxu0 0.0
    %1357 = vmatpush2.msra.mxu0 0.0
    %1358 = vmatprep.subr.mxu0 0.0
    %1359 = vmatpush2.msra.mxu0 0.0
    %1360 = vmatprep.subr.mxu0 0.0
    %1361 = vmatpush2.msra.mxu0 0.0
    %1362 = vmatprep.subr.mxu0 0.0
    %1363 = vmatpush2.msra.mxu0 0.0
    %1364 = vmatprep.subr.mxu0 0.0
    %1365 = vmatpush2.msra.mxu0 0.0
    %1366 = vmatprep.subr.mxu0 0.0
    %1367 = vmatpush2.msra.mxu0 0.0
    %1368 = vmatprep.subr.mxu0 0.0
    %1369 = vmatpush2.msra.mxu0 0.0
    %1370 = vmatprep.subr.mxu0 0.0
    %1371 = vmatpush2.msra.mxu0 0.0
    %1372 = vmatprep.subr.mxu0 0.0
    %1373 = vmatpush2.msra.mxu0 0.0
    %1374 = vmatprep.mubr.f32.mxu0 0.0
    %1375 = vmatmul.mubr.f32.gmra.mxu0 %v1308
    %v1376 = vpop.f32.mrf.mxu0
    %v1377 = vadd.f32 %v1305, %v1376
    %v1378 = vpop.f32.mrf.mxu0
    %1379 = vdwg.mxu0
    %v1380 = vmax.f32 %v1377, 0.0
    %v1381 = vld [vmem:[#allocation2 + $0x138] sm:$0xff]
    %v1382 = vld [vmem:[#allocation2 + $0x140] sm:$0xff]
    %v1383 = vld [vmem:[#allocation2 + $0x148] sm:$0xff]
    %v1384 = vld [vmem:[#allocation2 + $0x150] sm:$0xff]
    %v1385 = vld [vmem:[#allocation2 + $0x158] sm:$0x1]
    %v1386 = vlaneseq
    %v1387 = vshrl.u32 %v1386, 7
    %v1388 = vsub.s32 0, %v1387
    %v1389 = vrot.slane %v1385, %v1388
    %vm1390 = vcmask 261120
    %v1392 = vsel %vm1390, %v1380, 0
    %1394 = vmatprep.subr.mxu0 0.0
    %1395 = vmatpush1.msra.mxu0 0.0
    %1396 = vmatprep.subr.mxu0 0.0
    %1397 = vmatpush1.msra.mxu0 0.0
    %1398 = vmatprep.subr.mxu0 0.0
    %1399 = vmatpush1.msra.mxu0 0.0
    %1400 = vmatprep.subr.mxu0 0.0
    %1401 = vmatpush1.msra.mxu0 0.0
    %1402 = vmatprep.subr.mxu0 0.0
    %1403 = vmatpush1.msra.mxu0 0.0
    %1404 = vmatprep.subr.mxu0 0.0
    %1405 = vmatpush1.msra.mxu0 0.0
    %1406 = vmatprep.subr.mxu0 0.0
    %1407 = vmatpush1.msra.mxu0 0.0
    %1408 = vmatprep.subr.mxu0 0.0
    %1409 = vmatpush1.msra.mxu0 0.0
    %1410 = vmatprep.subr.mxu0 0.0
    %1411 = vmatpush1.msra.mxu0 0.0
    %1412 = vmatprep.subr.mxu0 0.0
    %1413 = vmatpush1.msra.mxu0 0.0
    %1414 = vmatprep.subr.mxu0 0.0
    %1415 = vmatpush1.msra.mxu0 0.0
    %1416 = vmatprep.subr.mxu0 0.0
    %1417 = vmatpush1.msra.mxu0 0.0
    %1418 = vmatprep.subr.mxu0 0.0
    %1419 = vmatpush1.msra.mxu0 %v1384
    %1420 = vmatprep.subr.mxu0 0.0
    %1421 = vmatpush1.msra.mxu0 %v1383
    %1422 = vmatprep.subr.mxu0 0.0
    %1423 = vmatpush1.msra.mxu0 %v1382
    %1424 = vmatprep.subr.mxu0 0.0
    %1425 = vmatpush1.msra.mxu0 %v1381
    %1426 = vmatprep.subr.mxu0 0.0
    %1427 = vmatpush2.msra.mxu0 0.0
    %1428 = vmatprep.subr.mxu0 0.0
    %1429 = vmatpush2.msra.mxu0 0.0
    %1430 = vmatprep.subr.mxu0 0.0
    %1431 = vmatpush2.msra.mxu0 0.0
    %1432 = vmatprep.subr.mxu0 0.0
    %1433 = vmatpush2.msra.mxu0 0.0
    %1434 = vmatprep.subr.mxu0 0.0
    %1435 = vmatpush2.msra.mxu0 0.0
    %1436 = vmatprep.subr.mxu0 0.0
    %1437 = vmatpush2.msra.mxu0 0.0
    %1438 = vmatprep.subr.mxu0 0.0
    %1439 = vmatpush2.msra.mxu0 0.0
    %1440 = vmatprep.subr.mxu0 0.0
    %1441 = vmatpush2.msra.mxu0 0.0
    %1442 = vmatprep.subr.mxu0 0.0
    %1443 = vmatpush2.msra.mxu0 0.0
    %1444 = vmatprep.subr.mxu0 0.0
    %1445 = vmatpush2.msra.mxu0 0.0
    %1446 = vmatprep.subr.mxu0 0.0
    %1447 = vmatpush2.msra.mxu0 0.0
    %1448 = vmatprep.subr.mxu0 0.0
    %1449 = vmatpush2.msra.mxu0 0.0
    %1450 = vmatprep.subr.mxu0 0.0
    %1451 = vmatpush2.msra.mxu0 0.0
    %1452 = vmatprep.subr.mxu0 0.0
    %1453 = vmatpush2.msra.mxu0 0.0
    %1454 = vmatprep.subr.mxu0 0.0
    %1455 = vmatpush2.msra.mxu0 0.0
    %1456 = vmatprep.subr.mxu0 0.0
    %1457 = vmatpush2.msra.mxu0 0.0
    %1458 = vmatprep.mubr.f32.mxu0 0.0
    %1459 = vmatmul.mubr.f32.gmra.mxu0 %v1392
    %v1460 = vpop.f32.mrf.mxu0
    %v1461 = vadd.f32 %v1389, %v1460
    %v1462 = vpop.f32.mrf.mxu0
    %1463 = vdwg.mxu0
    %vm1464 = vcmp.eq.s32.totalorder %v35, 0
    %v1465 = vsub.f32 0.0, %v1461
    %v1466 = vmul.f32 %v1465, 1.442695
    %v1467 = vpow.pop %v1466
    %v1468 = vadd.f32 %v1467, 1.0
    %v1469 = vrcp.pop %v1468
    %v1470 = vmul.f32 1.0, %v1469
    %v1471 = vsel %vm1464, %v1470, %v1461
    %vm1472 = vcmask 9216
    %1473 = vst.msk [vmem:[%s4] sm:$0x3] %vm1472, %v1471
    // Predicated region
    $region22: #{forward.1} parent=1 // pred_check
      _
    $region23: #{forward.1} parent=1 // pred_check_branch
      %1475 = sbr.rel (0) target = $region25
    $region24: #{forward.1} parent=1 // pred_region
      _
    $region25: #{forward.1} parent=1 // pred_fallthru
      _
    // Predicated region
    $region26: #{forward.1} parent=1 // pred_check
      _
    $region27: #{forward.1} parent=1 // pred_check_branch
      %1477 = sbr.rel (0) target = $region29
    $region28: #{forward.1} parent=1 // pred_region
      _
    $region29: #{forward.1} parent=1 // pred_fallthru
      _
    %1478 = vsyncpa [#allocation3], 1

</llo_original>
